<compile_context>
chip_gen: v5e
topology: v5e:2x2
jax: 0.10.0
libtpu: 0.0.40
codegen_flags: <defaults>
</compile_context>

<pallas_src>
import functools
import math

import jax
import jax.numpy as jnp
from jax.experimental import pallas as pl
from jax.experimental.pallas import tpu as pltpu


def _mha_block_kernel(q_ref, k_ref, v_ref, w_ref, vec_ref, o_ref, *,
                      nhead, eps, batched_heads):
    bt, lq, d = q_ref.shape
    lk = k_ref.shape[1]
    hd = d // nhead

    # Packed per-feature vectors: rows = [bq*scale, bk, bv, bo, gamma, beta, 0, 0].
    bq = vec_ref[0:1, :]
    bk = vec_ref[1:2, :]
    bv = vec_ref[2:3, :]
    bo = vec_ref[3:4, :]
    gamma = vec_ref[4:5, :]
    beta = vec_ref[5:6, :]

    w = w_ref[...]                                     # (4, D, D) bf16

    # Flatten (bt, L, D) -> (bt*L, D) so each projection is one wide MXU call.
    q2 = q_ref[...].reshape(bt * lq, d)                # f32, kept for residual
    k2 = k_ref[...].reshape(bt * lk, d)
    v2 = v_ref[...].reshape(bt * lk, d)

    # bf16 operands, f32 accumulation.  1/sqrt(hd) is pre-folded into w[0]/bq.
    qp = jnp.dot(q2.astype(jnp.bfloat16), w[0],
                 preferred_element_type=jnp.float32) + bq
    kp = jnp.dot(k2.astype(jnp.bfloat16), w[1],
                 preferred_element_type=jnp.float32) + bk
    vp = jnp.dot(v2.astype(jnp.bfloat16), w[2],
                 preferred_element_type=jnp.float32) + bv

    if batched_heads:
        # Heads split by reshape only; two batched contractions over (b, h);
        # heads merged back by a single reshape (no concat).
        qh = qp.reshape(bt, lq, nhead, hd).astype(jnp.bfloat16)
        kh = kp.reshape(bt, lk, nhead, hd).astype(jnp.bfloat16)
        vh = vp.reshape(bt, lk, nhead, hd).astype(jnp.bfloat16)

        s = jnp.einsum("bqhd,bkhd->bhqk", qh, kh,
                       preferred_element_type=jnp.float32)
        s = s - jnp.max(s, axis=-1, keepdims=True)
        p = jnp.exp(s)
        p = p * pl.reciprocal(jnp.sum(p, axis=-1, keepdims=True), approx=True)
        o = jnp.einsum("bhqk,bkhd->bqhd", p.astype(jnp.bfloat16), vh,
                       preferred_element_type=jnp.float32)   # (bt, lq, H, hd)
        attn = o.reshape(bt * lq, d)
    else:
        # Conservative fallback: small Python loop over heads only (not b*h),
        # each head batched over the bt axis.
        qh = qp.reshape(bt, lq, d)
        kh = kp.reshape(bt, lk, d)
        vh = vp.reshape(bt, lk, d)
        outs = []
        for h in range(nhead):
            sl = slice(h * hd, (h + 1) * hd)
            s = jnp.einsum("bqd,bkd->bqk",
                           qh[:, :, sl].astype(jnp.bfloat16),
                           kh[:, :, sl].astype(jnp.bfloat16),
                           preferred_element_type=jnp.float32)
            s = s - jnp.max(s, axis=-1, keepdims=True)
            p = jnp.exp(s)
            p = p * pl.reciprocal(jnp.sum(p, axis=-1, keepdims=True),
                                  approx=True)
            outs.append(jnp.einsum("bqk,bkd->bqd",
                                   p.astype(jnp.bfloat16),
                                   vh[:, :, sl].astype(jnp.bfloat16),
                                   preferred_element_type=jnp.float32))
        attn = jnp.concatenate(outs, axis=-1).reshape(bt * lq, d)

    out = jnp.dot(attn.astype(jnp.bfloat16), w[3],
                  preferred_element_type=jnp.float32) + bo

    # Dropout == identity (inference).
    # TODO(synk): training-mode dropout mask via pltpu.prng_random_bits.

    # Residual + LayerNorm, one-pass stats, all f32.
    y = q2 + out
    mean = jnp.mean(y, axis=-1, keepdims=True)
    var = jnp.mean(y * y, axis=-1, keepdims=True) - mean * mean
    y = (y - mean) * jax.lax.rsqrt(var + eps)
    o_ref[...] = (y * gamma + beta).reshape(bt, lq, d)


def _vmem_estimate(bt, lq, lk, d, nhead):
    """Rough per-grid-step VMEM bytes (tiles + in-kernel intermediates)."""
    f32, bf16 = 4, 2
    est = 2 * f32 * (2 * bt * lq * d + 2 * bt * lk * d)       # q/k/v/out tiles, 2 bufs
    est += bf16 * 4 * d * d + f32 * 8 * d                     # packed consts
    est += (f32 + bf16) * bt * (lq + 2 * lk) * d              # qp/kp/vp + bf16 casts
    est += 3 * f32 * bt * nhead * lq * lk                     # scores / exp / probs
    est += (2 * f32 + bf16) * bt * lq * d                     # attn out, residual, y
    return est


def _pick_block_batch(b, lq, lk, d, nhead, max_block, budget):
    """Largest divisor of b that fits the VMEM budget and keeps >=2 grid steps."""
    best = 1
    for c in range(1, min(b, max_block) + 1):
        if b % c:
            continue
        if b > 1 and b // c < 2:          # never collapse the grid to 1 step
            continue
        if _vmem_estimate(c, lq, lk, d, nhead) > budget:
            continue
        best = c
    return best


def _build_mha_call(B, Lq, Lk, D, bt, nhead, eps, vmem_limit_bytes,
                    batched_heads, single_buffer_consts):
    kernel = functools.partial(_mha_block_kernel, nhead=nhead, eps=eps,
                               batched_heads=batched_heads)
    const_kw = ({"pipeline_mode": pl.Buffered(buffer_count=1)}
                if single_buffer_consts else {})
    return pl.pallas_call(
        kernel,
        out_shape=jax.ShapeDtypeStruct((B, Lq, D), jnp.float32),
        grid=(B // bt,),
        in_specs=[
            pl.BlockSpec((bt, Lq, D), lambda i: (i, 0, 0)),     # query block
            pl.BlockSpec((bt, Lk, D), lambda i: (i, 0, 0)),     # key block
            pl.BlockSpec((bt, Lk, D), lambda i: (i, 0, 0)),     # value block
            pl.BlockSpec((4, D, D), lambda i: (0, 0, 0), **const_kw),   # weights
            pl.BlockSpec((8, D), lambda i: (0, 0), **const_kw),         # vectors
        ],
        out_specs=pl.BlockSpec((bt, Lq, D), lambda i: (i, 0, 0)),
        compiler_params=pltpu.CompilerParams(
            dimension_semantics=("parallel",),
            vmem_limit_bytes=vmem_limit_bytes),
    )


def multi_head_attn_block(query, key, value, params, *, nhead=4, eps=1e-5,
                          max_block_batch=32):
    """query/key/value: (B, L, D) float32.  Returns (B, Lq, D) float32."""
    B, Lq, D = query.shape
    _, Lk, _ = key.shape
    hd = D // nhead
    scale = 1.0 / math.sqrt(hd)

    # Generation-aware VMEM budget (v7x has half the VMEM of v5e/v6e).
    try:
        vmem_cap = int(pltpu.get_tpu_info().vmem_capacity_bytes)
    except Exception:
        vmem_cap = 64 * 1024 * 1024                 # conservative fallback
    bt = _pick_block_batch(B, Lq, Lk, D, nhead, max_block_batch,
                           budget=vmem_cap // 2)
    est = _vmem_estimate(bt, Lq, Lk, D, nhead)
    vmem_limit = max(32 * 1024 * 1024, min(vmem_cap * 3 // 4, 2 * est))

    # Pack weights (pre-transposed so kernel does x @ W + b) as bf16 MXU
    # operands; fold 1/sqrt(head_dim) into Wq AND bq.  Biases/LN params stay f32.
    # TODO(synk): for pure self-attention (q is k is v) pack Wq|Wk|Wv into one
    #             (D, 3D) weight and run a single fused projection matmul.
    w = jnp.stack([params["wq"].T * scale, params["wk"].T,
                   params["wv"].T, params["wo"].T],
                  axis=0).astype(jnp.bfloat16)                     # (4, D, D)
    vecs = jnp.concatenate(
        [jnp.stack([params["bq"] * scale, params["bk"], params["bv"],
                    params["bo"], params["gamma"], params["beta"]], axis=0),
         jnp.zeros((2, D), jnp.float32)],
        axis=0).astype(jnp.float32)                                # (8, D)

    # Preferred config first; fall back to proven lowering paths if the local
    # toolchain rejects batched dot_general or single-buffered constant specs.
    last_err = None
    for batched_heads, single_buf in ((True, True), (True, False),
                                      (False, True), (False, False)):
        try:
            fn = _build_mha_call(B, Lq, Lk, D, bt, nhead, eps, vmem_limit,
                                 batched_heads, single_buf)
            return jax.block_until_ready(fn(query, key, value, w, vecs))
        except Exception as e:                      # lowering/compile failure
            last_err = e
    raise last_err


def _reference(query, key, value, params, *, nhead=4, eps=1e-5):
    """Pure-JAX f32 reference matching nn.MultiheadAttention (eval mode)."""
    B, Lq, D = query.shape
    hd = D // nhead
    scale = 1.0 / math.sqrt(hd)

    def proj(x, w, b):
        return x @ w.T + b

    qp = proj(query, params["wq"], params["bq"])
    kp = proj(key, params["wk"], params["bk"])
    vp = proj(value, params["wv"], params["bv"])

    def split(x):
        return x.reshape(B, -1, nhead, hd).transpose(0, 2, 1, 3)

    qh, kh, vh = split(qp), split(kp), split(vp)
    s = jnp.einsum("bhqd,bhkd->bhqk", qh, kh) * scale
    p = jax.nn.softmax(s, axis=-1)
    o = jnp.einsum("bhqk,bhkd->bhqd", p, vh)
    o = o.transpose(0, 2, 1, 3).reshape(B, Lq, D)
    o = proj(o, params["wo"], params["bo"])
    y = query + o
    mean = jnp.mean(y, axis=-1, keepdims=True)
    var = jnp.mean(jnp.square(y - mean), axis=-1, keepdims=True)
    return (y - mean) * jax.lax.rsqrt(var + eps) * params["gamma"] + params["beta"]


if __name__ == "__main__":
    B, Lq, Lk, D, NHEAD = 2, 8, 8, 128, 4
    key0 = jax.random.PRNGKey(0)
    ks = jax.random.split(key0, 12)

    query = jax.random.normal(ks[0], (B, Lq, D), jnp.float32)
    key_in = jax.random.normal(ks[1], (B, Lk, D), jnp.float32)
    value = jax.random.normal(ks[2], (B, Lk, D), jnp.float32)

    s = 0.05  # small deterministic init
    params = {
        "wq": jax.random.normal(ks[3], (D, D), jnp.float32) * s,
        "wk": jax.random.normal(ks[4], (D, D), jnp.float32) * s,
        "wv": jax.random.normal(ks[5], (D, D), jnp.float32) * s,
        "bq": jax.random.normal(ks[6], (D,), jnp.float32) * s,
        "bk": jax.random.normal(ks[7], (D,), jnp.float32) * s,
        "bv": jax.random.normal(ks[8], (D,), jnp.float32) * s,
        "wo": jax.random.normal(ks[9], (D, D), jnp.float32) * s,
        "bo": jax.random.normal(ks[10], (D,), jnp.float32) * s,
        "gamma": jnp.ones((D,), jnp.float32),
        "beta": jnp.zeros((D,), jnp.float32),
    }

    out = multi_head_attn_block(query, key_in, value, params, nhead=NHEAD)
    out = jax.block_until_ready(out)

    ref = _reference(query, key_in, value, params, nhead=NHEAD)
    assert out.shape == (B, Lq, D)
    # Tolerance covers bf16 MXU operands (f32 accumulation) and the EUP
    # approximate reciprocal in the softmax denominator.
    assert jnp.allclose(out, ref, atol=3e-2, rtol=3e-2), \
        float(jnp.max(jnp.abs(out - ref)))

    print("KERNEL_OK")
</pallas_src>

<mosaic_0001>
module attributes {stable_mosaic.version = 11 : i64} {
  func.func @_mha_block_kernel(%arg0: i32, %arg1: memref<1x8x128xf32, #tpu.memory_space<vmem>>, %arg2: memref<1x8x128xf32, #tpu.memory_space<vmem>>, %arg3: memref<1x8x128xf32, #tpu.memory_space<vmem>>, %arg4: memref<4x128x128xbf16, #tpu.memory_space<vmem>>, %arg5: memref<8x128xf32, #tpu.memory_space<vmem>>, %arg6: memref<1x8x128xf32, #tpu.memory_space<vmem>>) attributes {dimension_semantics = [#tpu.dimension_semantics<parallel>], iteration_bounds = array<i64: 2>, scalar_prefetch = 0 : i64, scratch_operands = 0 : i64, tpu.core_type = #tpu.core_type<tc>, window_params = [{transform_indices = @transform_0, window_bounds = array<i64: 1, 8, 128>}, {transform_indices = @transform_1, window_bounds = array<i64: 1, 8, 128>}, {transform_indices = @transform_2, window_bounds = array<i64: 1, 8, 128>}, {pipeline_mode = #tpu.pipeline_mode<synchronous>, transform_indices = @transform_3, window_bounds = array<i64: 4, 128, 128>}, {pipeline_mode = #tpu.pipeline_mode<synchronous>, transform_indices = @transform_4, window_bounds = array<i64: 8, 128>}, {transform_indices = @transform_5, window_bounds = array<i64: 1, 8, 128>}]} {
    %c0 = arith.constant 0 : index
    %c0_0 = arith.constant 0 : index
    %0 = vector.load %arg5[%c0, %c0_0] : memref<8x128xf32, #tpu.memory_space<vmem>>, vector<1x128xf32>
    %c1 = arith.constant 1 : index
    %c0_1 = arith.constant 0 : index
    %1 = vector.load %arg5[%c1, %c0_1] : memref<8x128xf32, #tpu.memory_space<vmem>>, vector<1x128xf32>
    %c2 = arith.constant 2 : index
    %c0_2 = arith.constant 0 : index
    %2 = vector.load %arg5[%c2, %c0_2] : memref<8x128xf32, #tpu.memory_space<vmem>>, vector<1x128xf32>
    %c3 = arith.constant 3 : index
    %c0_3 = arith.constant 0 : index
    %3 = vector.load %arg5[%c3, %c0_3] : memref<8x128xf32, #tpu.memory_space<vmem>>, vector<1x128xf32>
    %c4 = arith.constant 4 : index
    %c0_4 = arith.constant 0 : index
    %4 = vector.load %arg5[%c4, %c0_4] : memref<8x128xf32, #tpu.memory_space<vmem>>, vector<1x128xf32>
    %c5 = arith.constant 5 : index
    %c0_5 = arith.constant 0 : index
    %5 = vector.load %arg5[%c5, %c0_5] : memref<8x128xf32, #tpu.memory_space<vmem>>, vector<1x128xf32>
    %c0_6 = arith.constant 0 : index
    %c0_7 = arith.constant 0 : index
    %c0_8 = arith.constant 0 : index
    %6 = vector.load %arg4[%c0_6, %c0_7, %c0_8] : memref<4x128x128xbf16, #tpu.memory_space<vmem>>, vector<4x128x128xbf16>
    %c0_9 = arith.constant 0 : index
    %c0_10 = arith.constant 0 : index
    %c0_11 = arith.constant 0 : index
    %7 = vector.load %arg1[%c0_9, %c0_10, %c0_11] : memref<1x8x128xf32, #tpu.memory_space<vmem>>, vector<1x8x128xf32>
    %8 = vector.shape_cast %7 : vector<1x8x128xf32> to vector<8x128xf32>
    %c0_12 = arith.constant 0 : index
    %c0_13 = arith.constant 0 : index
    %c0_14 = arith.constant 0 : index
    %9 = vector.load %arg2[%c0_12, %c0_13, %c0_14] : memref<1x8x128xf32, #tpu.memory_space<vmem>>, vector<1x8x128xf32>
    %10 = vector.shape_cast %9 : vector<1x8x128xf32> to vector<8x128xf32>
    %c0_15 = arith.constant 0 : index
    %c0_16 = arith.constant 0 : index
    %c0_17 = arith.constant 0 : index
    %11 = vector.load %arg3[%c0_15, %c0_16, %c0_17] : memref<1x8x128xf32, #tpu.memory_space<vmem>>, vector<1x8x128xf32>
    %12 = vector.shape_cast %11 : vector<1x8x128xf32> to vector<8x128xf32>
    %13 = arith.truncf %8 : vector<8x128xf32> to vector<8x128xbf16>
    %14 = vector.extract_strided_slice %6 {offsets = [0, 0, 0], sizes = [1, 128, 128], strides = [1, 1, 1]} : vector<4x128x128xbf16> to vector<1x128x128xbf16>
    %15 = vector.shape_cast %14 : vector<1x128x128xbf16> to vector<128x128xbf16>
    %cst = arith.constant dense<0.000000e+00> : vector<8x128xf32>
    %16 = tpu.matmul %13, %15, %cst {dimension_numbers = #tpu.dot_dimension_numbers<[1], [0], [0], [1], [0, 0, 1, 1], [], []>} : vector<8x128xbf16>, vector<128x128xbf16>, vector<8x128xf32> -> vector<8x128xf32>
    %17 = vector.broadcast %0 : vector<1x128xf32> to vector<8x128xf32>
    %18 = arith.addf %16, %17 : vector<8x128xf32>
    %19 = arith.truncf %10 : vector<8x128xf32> to vector<8x128xbf16>
    %20 = vector.extract_strided_slice %6 {offsets = [1, 0, 0], sizes = [1, 128, 128], strides = [1, 1, 1]} : vector<4x128x128xbf16> to vector<1x128x128xbf16>
    %21 = vector.shape_cast %20 : vector<1x128x128xbf16> to vector<128x128xbf16>
    %cst_18 = arith.constant dense<0.000000e+00> : vector<8x128xf32>
    %22 = tpu.matmul %19, %21, %cst_18 {dimension_numbers = #tpu.dot_dimension_numbers<[1], [0], [0], [1], [0, 0, 1, 1], [], []>} : vector<8x128xbf16>, vector<128x128xbf16>, vector<8x128xf32> -> vector<8x128xf32>
    %23 = vector.broadcast %1 : vector<1x128xf32> to vector<8x128xf32>
    %24 = arith.addf %22, %23 : vector<8x128xf32>
    %25 = arith.truncf %12 : vector<8x128xf32> to vector<8x128xbf16>
    %26 = vector.extract_strided_slice %6 {offsets = [2, 0, 0], sizes = [1, 128, 128], strides = [1, 1, 1]} : vector<4x128x128xbf16> to vector<1x128x128xbf16>
    %27 = vector.shape_cast %26 : vector<1x128x128xbf16> to vector<128x128xbf16>
    %cst_19 = arith.constant dense<0.000000e+00> : vector<8x128xf32>
    %28 = tpu.matmul %25, %27, %cst_19 {dimension_numbers = #tpu.dot_dimension_numbers<[1], [0], [0], [1], [0, 0, 1, 1], [], []>} : vector<8x128xbf16>, vector<128x128xbf16>, vector<8x128xf32> -> vector<8x128xf32>
    %29 = vector.broadcast %2 : vector<1x128xf32> to vector<8x128xf32>
    %30 = arith.addf %28, %29 : vector<8x128xf32>
    %31 = vector.shape_cast %18 : vector<8x128xf32> to vector<1x8x128xf32>
    %32 = vector.shape_cast %24 : vector<8x128xf32> to vector<1x8x128xf32>
    %33 = vector.shape_cast %30 : vector<8x128xf32> to vector<1x8x128xf32>
    %34 = vector.extract_strided_slice %31 {offsets = [0, 0, 0], sizes = [1, 8, 32], strides = [1, 1, 1]} : vector<1x8x128xf32> to vector<1x8x32xf32>
    %35 = arith.truncf %34 : vector<1x8x32xf32> to vector<1x8x32xbf16>
    %36 = vector.extract_strided_slice %32 {offsets = [0, 0, 0], sizes = [1, 8, 32], strides = [1, 1, 1]} : vector<1x8x128xf32> to vector<1x8x32xf32>
    %37 = arith.truncf %36 : vector<1x8x32xf32> to vector<1x8x32xbf16>
    "tpu.trace_start"() <{level = 10 : i32, message = "bqd,bkd->bqk"}> : () -> ()
    %cst_20 = arith.constant dense<0.000000e+00> : vector<1x8x8xf32>
    %38 = tpu.matmul %35, %37, %cst_20 {dimension_numbers = #tpu.dot_dimension_numbers<[2], [2], [1], [1], [0, 0, 0, 1, 1, 1], [0], [0]>} : vector<1x8x32xbf16>, vector<1x8x32xbf16>, vector<1x8x8xf32> -> vector<1x8x8xf32>
    "tpu.trace_stop"() : () -> ()
    %cst_21 = arith.constant dense<0xFF800000> : vector<1x8xf32>
    %39 = vector.multi_reduction <maximumf>, %38, %cst_21 [2] : vector<1x8x8xf32> to vector<1x8xf32>
    %40 = vector.shape_cast %39 : vector<1x8xf32> to vector<1x8x1xf32>
    %41 = vector.broadcast %40 : vector<1x8x1xf32> to vector<1x8x8xf32>
    %42 = arith.subf %38, %41 : vector<1x8x8xf32>
    %43 = math.exp %42 : vector<1x8x8xf32>
    %cst_22 = arith.constant dense<0.000000e+00> : vector<1x8xf32>
    %44 = vector.multi_reduction <add>, %43, %cst_22 [2] : vector<1x8x8xf32> to vector<1x8xf32>
    %45 = vector.shape_cast %44 : vector<1x8xf32> to vector<1x8x1xf32>
    %46 = tpu.reciprocal %45 {approx = true} : vector<1x8x1xf32> -> vector<1x8x1xf32>
    %47 = vector.broadcast %46 : vector<1x8x1xf32> to vector<1x8x8xf32>
    %48 = arith.mulf %43, %47 : vector<1x8x8xf32>
    %49 = arith.truncf %48 : vector<1x8x8xf32> to vector<1x8x8xbf16>
    %50 = vector.extract_strided_slice %33 {offsets = [0, 0, 0], sizes = [1, 8, 32], strides = [1, 1, 1]} : vector<1x8x128xf32> to vector<1x8x32xf32>
    %51 = arith.truncf %50 : vector<1x8x32xf32> to vector<1x8x32xbf16>
    "tpu.trace_start"() <{level = 10 : i32, message = "bqk,bkd->bqd"}> : () -> ()
    %cst_23 = arith.constant dense<0.000000e+00> : vector<1x8x32xf32>
    %52 = tpu.matmul %49, %51, %cst_23 {dimension_numbers = #tpu.dot_dimension_numbers<[2], [1], [1], [2], [0, 0, 0, 1, 1, 2], [0], [0]>} : vector<1x8x8xbf16>, vector<1x8x32xbf16>, vector<1x8x32xf32> -> vector<1x8x32xf32>
    "tpu.trace_stop"() : () -> ()
    %53 = vector.extract_strided_slice %31 {offsets = [0, 0, 32], sizes = [1, 8, 32], strides = [1, 1, 1]} : vector<1x8x128xf32> to vector<1x8x32xf32>
    %54 = arith.truncf %53 : vector<1x8x32xf32> to vector<1x8x32xbf16>
    %55 = vector.extract_strided_slice %32 {offsets = [0, 0, 32], sizes = [1, 8, 32], strides = [1, 1, 1]} : vector<1x8x128xf32> to vector<1x8x32xf32>
    %56 = arith.truncf %55 : vector<1x8x32xf32> to vector<1x8x32xbf16>
    "tpu.trace_start"() <{level = 10 : i32, message = "bqd,bkd->bqk"}> : () -> ()
    %cst_24 = arith.constant dense<0.000000e+00> : vector<1x8x8xf32>
    %57 = tpu.matmul %54, %56, %cst_24 {dimension_numbers = #tpu.dot_dimension_numbers<[2], [2], [1], [1], [0, 0, 0, 1, 1, 1], [0], [0]>} : vector<1x8x32xbf16>, vector<1x8x32xbf16>, vector<1x8x8xf32> -> vector<1x8x8xf32>
    "tpu.trace_stop"() : () -> ()
    %cst_25 = arith.constant dense<0xFF800000> : vector<1x8xf32>
    %58 = vector.multi_reduction <maximumf>, %57, %cst_25 [2] : vector<1x8x8xf32> to vector<1x8xf32>
    %59 = vector.shape_cast %58 : vector<1x8xf32> to vector<1x8x1xf32>
    %60 = vector.broadcast %59 : vector<1x8x1xf32> to vector<1x8x8xf32>
    %61 = arith.subf %57, %60 : vector<1x8x8xf32>
    %62 = math.exp %61 : vector<1x8x8xf32>
    %cst_26 = arith.constant dense<0.000000e+00> : vector<1x8xf32>
    %63 = vector.multi_reduction <add>, %62, %cst_26 [2] : vector<1x8x8xf32> to vector<1x8xf32>
    %64 = vector.shape_cast %63 : vector<1x8xf32> to vector<1x8x1xf32>
    %65 = tpu.reciprocal %64 {approx = true} : vector<1x8x1xf32> -> vector<1x8x1xf32>
    %66 = vector.broadcast %65 : vector<1x8x1xf32> to vector<1x8x8xf32>
    %67 = arith.mulf %62, %66 : vector<1x8x8xf32>
    %68 = arith.truncf %67 : vector<1x8x8xf32> to vector<1x8x8xbf16>
    %69 = vector.extract_strided_slice %33 {offsets = [0, 0, 32], sizes = [1, 8, 32], strides = [1, 1, 1]} : vector<1x8x128xf32> to vector<1x8x32xf32>
    %70 = arith.truncf %69 : vector<1x8x32xf32> to vector<1x8x32xbf16>
    "tpu.trace_start"() <{level = 10 : i32, message = "bqk,bkd->bqd"}> : () -> ()
    %cst_27 = arith.constant dense<0.000000e+00> : vector<1x8x32xf32>
    %71 = tpu.matmul %68, %70, %cst_27 {dimension_numbers = #tpu.dot_dimension_numbers<[2], [1], [1], [2], [0, 0, 0, 1, 1, 2], [0], [0]>} : vector<1x8x8xbf16>, vector<1x8x32xbf16>, vector<1x8x32xf32> -> vector<1x8x32xf32>
    "tpu.trace_stop"() : () -> ()
    %72 = vector.extract_strided_slice %31 {offsets = [0, 0, 64], sizes = [1, 8, 32], strides = [1, 1, 1]} : vector<1x8x128xf32> to vector<1x8x32xf32>
    %73 = arith.truncf %72 : vector<1x8x32xf32> to vector<1x8x32xbf16>
    %74 = vector.extract_strided_slice %32 {offsets = [0, 0, 64], sizes = [1, 8, 32], strides = [1, 1, 1]} : vector<1x8x128xf32> to vector<1x8x32xf32>
    %75 = arith.truncf %74 : vector<1x8x32xf32> to vector<1x8x32xbf16>
    "tpu.trace_start"() <{level = 10 : i32, message = "bqd,bkd->bqk"}> : () -> ()
    %cst_28 = arith.constant dense<0.000000e+00> : vector<1x8x8xf32>
    %76 = tpu.matmul %73, %75, %cst_28 {dimension_numbers = #tpu.dot_dimension_numbers<[2], [2], [1], [1], [0, 0, 0, 1, 1, 1], [0], [0]>} : vector<1x8x32xbf16>, vector<1x8x32xbf16>, vector<1x8x8xf32> -> vector<1x8x8xf32>
    "tpu.trace_stop"() : () -> ()
    %cst_29 = arith.constant dense<0xFF800000> : vector<1x8xf32>
    %77 = vector.multi_reduction <maximumf>, %76, %cst_29 [2] : vector<1x8x8xf32> to vector<1x8xf32>
    %78 = vector.shape_cast %77 : vector<1x8xf32> to vector<1x8x1xf32>
    %79 = vector.broadcast %78 : vector<1x8x1xf32> to vector<1x8x8xf32>
    %80 = arith.subf %76, %79 : vector<1x8x8xf32>
    %81 = math.exp %80 : vector<1x8x8xf32>
    %cst_30 = arith.constant dense<0.000000e+00> : vector<1x8xf32>
    %82 = vector.multi_reduction <add>, %81, %cst_30 [2] : vector<1x8x8xf32> to vector<1x8xf32>
    %83 = vector.shape_cast %82 : vector<1x8xf32> to vector<1x8x1xf32>
    %84 = tpu.reciprocal %83 {approx = true} : vector<1x8x1xf32> -> vector<1x8x1xf32>
    %85 = vector.broadcast %84 : vector<1x8x1xf32> to vector<1x8x8xf32>
    %86 = arith.mulf %81, %85 : vector<1x8x8xf32>
    %87 = arith.truncf %86 : vector<1x8x8xf32> to vector<1x8x8xbf16>
    %88 = vector.extract_strided_slice %33 {offsets = [0, 0, 64], sizes = [1, 8, 32], strides = [1, 1, 1]} : vector<1x8x128xf32> to vector<1x8x32xf32>
    %89 = arith.truncf %88 : vector<1x8x32xf32> to vector<1x8x32xbf16>
    "tpu.trace_start"() <{level = 10 : i32, message = "bqk,bkd->bqd"}> : () -> ()
    %cst_31 = arith.constant dense<0.000000e+00> : vector<1x8x32xf32>
    %90 = tpu.matmul %87, %89, %cst_31 {dimension_numbers = #tpu.dot_dimension_numbers<[2], [1], [1], [2], [0, 0, 0, 1, 1, 2], [0], [0]>} : vector<1x8x8xbf16>, vector<1x8x32xbf16>, vector<1x8x32xf32> -> vector<1x8x32xf32>
    "tpu.trace_stop"() : () -> ()
    %91 = vector.extract_strided_slice %31 {offsets = [0, 0, 96], sizes = [1, 8, 32], strides = [1, 1, 1]} : vector<1x8x128xf32> to vector<1x8x32xf32>
    %92 = arith.truncf %91 : vector<1x8x32xf32> to vector<1x8x32xbf16>
    %93 = vector.extract_strided_slice %32 {offsets = [0, 0, 96], sizes = [1, 8, 32], strides = [1, 1, 1]} : vector<1x8x128xf32> to vector<1x8x32xf32>
    %94 = arith.truncf %93 : vector<1x8x32xf32> to vector<1x8x32xbf16>
    "tpu.trace_start"() <{level = 10 : i32, message = "bqd,bkd->bqk"}> : () -> ()
    %cst_32 = arith.constant dense<0.000000e+00> : vector<1x8x8xf32>
    %95 = tpu.matmul %92, %94, %cst_32 {dimension_numbers = #tpu.dot_dimension_numbers<[2], [2], [1], [1], [0, 0, 0, 1, 1, 1], [0], [0]>} : vector<1x8x32xbf16>, vector<1x8x32xbf16>, vector<1x8x8xf32> -> vector<1x8x8xf32>
    "tpu.trace_stop"() : () -> ()
    %cst_33 = arith.constant dense<0xFF800000> : vector<1x8xf32>
    %96 = vector.multi_reduction <maximumf>, %95, %cst_33 [2] : vector<1x8x8xf32> to vector<1x8xf32>
    %97 = vector.shape_cast %96 : vector<1x8xf32> to vector<1x8x1xf32>
    %98 = vector.broadcast %97 : vector<1x8x1xf32> to vector<1x8x8xf32>
    %99 = arith.subf %95, %98 : vector<1x8x8xf32>
    %100 = math.exp %99 : vector<1x8x8xf32>
    %cst_34 = arith.constant dense<0.000000e+00> : vector<1x8xf32>
    %101 = vector.multi_reduction <add>, %100, %cst_34 [2] : vector<1x8x8xf32> to vector<1x8xf32>
    %102 = vector.shape_cast %101 : vector<1x8xf32> to vector<1x8x1xf32>
    %103 = tpu.reciprocal %102 {approx = true} : vector<1x8x1xf32> -> vector<1x8x1xf32>
    %104 = vector.broadcast %103 : vector<1x8x1xf32> to vector<1x8x8xf32>
    %105 = arith.mulf %100, %104 : vector<1x8x8xf32>
    %106 = arith.truncf %105 : vector<1x8x8xf32> to vector<1x8x8xbf16>
    %107 = vector.extract_strided_slice %33 {offsets = [0, 0, 96], sizes = [1, 8, 32], strides = [1, 1, 1]} : vector<1x8x128xf32> to vector<1x8x32xf32>
    %108 = arith.truncf %107 : vector<1x8x32xf32> to vector<1x8x32xbf16>
    "tpu.trace_start"() <{level = 10 : i32, message = "bqk,bkd->bqd"}> : () -> ()
    %cst_35 = arith.constant dense<0.000000e+00> : vector<1x8x32xf32>
    %109 = tpu.matmul %106, %108, %cst_35 {dimension_numbers = #tpu.dot_dimension_numbers<[2], [1], [1], [2], [0, 0, 0, 1, 1, 2], [0], [0]>} : vector<1x8x8xbf16>, vector<1x8x32xbf16>, vector<1x8x32xf32> -> vector<1x8x32xf32>
    "tpu.trace_stop"() : () -> ()
    %110 = tpu.concatenate %52, %71, %90, %109 in 2 : vector<1x8x32xf32>, vector<1x8x32xf32>, vector<1x8x32xf32>, vector<1x8x32xf32> -> vector<1x8x128xf32>
    %111 = vector.shape_cast %110 : vector<1x8x128xf32> to vector<8x128xf32>
    %112 = arith.truncf %111 : vector<8x128xf32> to vector<8x128xbf16>
    %113 = vector.extract_strided_slice %6 {offsets = [3, 0, 0], sizes = [1, 128, 128], strides = [1, 1, 1]} : vector<4x128x128xbf16> to vector<1x128x128xbf16>
    %114 = vector.shape_cast %113 : vector<1x128x128xbf16> to vector<128x128xbf16>
    %cst_36 = arith.constant dense<0.000000e+00> : vector<8x128xf32>
    %115 = tpu.matmul %112, %114, %cst_36 {dimension_numbers = #tpu.dot_dimension_numbers<[1], [0], [0], [1], [0, 0, 1, 1], [], []>} : vector<8x128xbf16>, vector<128x128xbf16>, vector<8x128xf32> -> vector<8x128xf32>
    %116 = vector.broadcast %3 : vector<1x128xf32> to vector<8x128xf32>
    %117 = arith.addf %115, %116 : vector<8x128xf32>
    %118 = arith.addf %8, %117 : vector<8x128xf32>
    %cst_37 = arith.constant dense<0.000000e+00> : vector<8xf32>
    %119 = vector.multi_reduction <add>, %118, %cst_37 [1] : vector<8x128xf32> to vector<8xf32>
    %120 = vector.shape_cast %119 : vector<8xf32> to vector<8x1xf32>
    %cst_38 = arith.constant 1.280000e+02 : f32
    %121 = vector.broadcast %cst_38 : f32 to vector<8x1xf32>
    %122 = arith.divf %120, %121 : vector<8x1xf32>
    %123 = arith.mulf %118, %118 : vector<8x128xf32>
    %cst_39 = arith.constant dense<0.000000e+00> : vector<8xf32>
    %124 = vector.multi_reduction <add>, %123, %cst_39 [1] : vector<8x128xf32> to vector<8xf32>
    %125 = vector.shape_cast %124 : vector<8xf32> to vector<8x1xf32>
    %cst_40 = arith.constant 1.280000e+02 : f32
    %126 = vector.broadcast %cst_40 : f32 to vector<8x1xf32>
    %127 = arith.divf %125, %126 : vector<8x1xf32>
    %128 = arith.mulf %122, %122 : vector<8x1xf32>
    %129 = arith.subf %127, %128 : vector<8x1xf32>
    %130 = vector.broadcast %122 : vector<8x1xf32> to vector<8x128xf32>
    %131 = arith.subf %118, %130 : vector<8x128xf32>
    %cst_41 = arith.constant 9.99999974E-6 : f32
    %132 = vector.broadcast %cst_41 : f32 to vector<8x1xf32>
    %133 = arith.addf %129, %132 : vector<8x1xf32>
    %134 = math.rsqrt %133 : vector<8x1xf32>
    %135 = vector.broadcast %134 : vector<8x1xf32> to vector<8x128xf32>
    %136 = arith.mulf %131, %135 : vector<8x128xf32>
    %137 = vector.broadcast %4 : vector<1x128xf32> to vector<8x128xf32>
    %138 = arith.mulf %136, %137 : vector<8x128xf32>
    %139 = vector.broadcast %5 : vector<1x128xf32> to vector<8x128xf32>
    %140 = arith.addf %138, %139 : vector<8x128xf32>
    %141 = vector.shape_cast %140 : vector<8x128xf32> to vector<1x8x128xf32>
    %c0_42 = arith.constant 0 : index
    %c0_43 = arith.constant 0 : index
    %c0_44 = arith.constant 0 : index
    %142 = vector.load %arg6[%c0_42, %c0_43, %c0_44] : memref<1x8x128xf32, #tpu.memory_space<vmem>>, vector<1x8x128xf32>
    tpu.vector_store %arg6[%c0_42, %c0_43, %c0_44], %141 {strides = array<i32>} : memref<1x8x128xf32, #tpu.memory_space<vmem>>, vector<1x8x128xf32>,
    return
  }
  func.func @transform_0(%arg0: i32) -> (i32, i32, i32) {
    %c0_i32 = arith.constant 0 : i32
    %c0_i32_0 = arith.constant 0 : i32
    %c0_i32_1 = arith.constant 0 : i32
    return %arg0, %c0_i32, %c0_i32_0 : i32, i32, i32
  }
  func.func @transform_1(%arg0: i32) -> (i32, i32, i32) {
    %c0_i32 = arith.constant 0 : i32
    %c0_i32_0 = arith.constant 0 : i32
    %c0_i32_1 = arith.constant 0 : i32
    return %arg0, %c0_i32, %c0_i32_0 : i32, i32, i32
  }
  func.func @transform_2(%arg0: i32) -> (i32, i32, i32) {
    %c0_i32 = arith.constant 0 : i32
    %c0_i32_0 = arith.constant 0 : i32
    %c0_i32_1 = arith.constant 0 : i32
    return %arg0, %c0_i32, %c0_i32_0 : i32, i32, i32
  }
  func.func @transform_3(%arg0: i32) -> (i32, i32, i32) {
    %c0_i32 = arith.constant 0 : i32
    %c0_i32_0 = arith.constant 0 : i32
    %c0_i32_1 = arith.constant 0 : i32
    %c0_i32_2 = arith.constant 0 : i32
    return %c0_i32, %c0_i32_0, %c0_i32_1 : i32, i32, i32
  }
  func.func @transform_4(%arg0: i32) -> (i32, i32) {
    %c0_i32 = arith.constant 0 : i32
    %c0_i32_0 = arith.constant 0 : i32
    %c0_i32_1 = arith.constant 0 : i32
    return %c0_i32, %c0_i32_0 : i32, i32
  }
  func.func @transform_5(%arg0: i32) -> (i32, i32, i32) {
    %c0_i32 = arith.constant 0 : i32
    %c0_i32_0 = arith.constant 0 : i32
    %c0_i32_1 = arith.constant 0 : i32
    return %arg0, %c0_i32, %c0_i32_0 : i32, i32, i32
  }
}

module attributes {stable_mosaic.version = 11 : i64} {
  func.func @_mha_block_kernel(%arg0: i32, %arg1: memref<1x8x128xf32, #tpu.memory_space<vmem>>, %arg2: memref<1x8x128xf32, #tpu.memory_space<vmem>>, %arg3: memref<1x8x128xf32, #tpu.memory_space<vmem>>, %arg4: memref<4x128x128xbf16, #tpu.memory_space<vmem>>, %arg5: memref<8x128xf32, #tpu.memory_space<vmem>>, %arg6: memref<1x8x128xf32, #tpu.memory_space<vmem>>) attributes {dimension_semantics = [#tpu.dimension_semantics<parallel>], iteration_bounds = array<i64: 2>, scalar_prefetch = 0 : i64, scratch_operands = 0 : i64, tpu.core_type = #tpu.core_type<tc>, window_params = [{transform_indices = @transform_0, window_bounds = array<i64: 1, 8, 128>}, {transform_indices = @transform_1, window_bounds = array<i64: 1, 8, 128>}, {transform_indices = @transform_2, window_bounds = array<i64: 1, 8, 128>}, {pipeline_mode = #tpu.pipeline_mode<synchronous>, transform_indices = @transform_3, window_bounds = array<i64: 4, 128, 128>}, {pipeline_mode = #tpu.pipeline_mode<synchronous>, transform_indices = @transform_4, window_bounds = array<i64: 8, 128>}, {transform_indices = @transform_5, window_bounds = array<i64: 1, 8, 128>}]} {
    %c0 = arith.constant 0 : index
    %c0_0 = arith.constant 0 : index
    %0 = vector.load %arg5[%c0, %c0_0] : memref<8x128xf32, #tpu.memory_space<vmem>>, vector<1x128xf32>
    %c1 = arith.constant 1 : index
    %c0_1 = arith.constant 0 : index
    %1 = vector.load %arg5[%c1, %c0_1] : memref<8x128xf32, #tpu.memory_space<vmem>>, vector<1x128xf32>
    %c2 = arith.constant 2 : index
    %c0_2 = arith.constant 0 : index
    %2 = vector.load %arg5[%c2, %c0_2] : memref<8x128xf32, #tpu.memory_space<vmem>>, vector<1x128xf32>
    %c3 = arith.constant 3 : index
    %c0_3 = arith.constant 0 : index
    %3 = vector.load %arg5[%c3, %c0_3] : memref<8x128xf32, #tpu.memory_space<vmem>>, vector<1x128xf32>
    %c4 = arith.constant 4 : index
    %c0_4 = arith.constant 0 : index
    %4 = vector.load %arg5[%c4, %c0_4] : memref<8x128xf32, #tpu.memory_space<vmem>>, vector<1x128xf32>
    %c5 = arith.constant 5 : index
    %c0_5 = arith.constant 0 : index
    %5 = vector.load %arg5[%c5, %c0_5] : memref<8x128xf32, #tpu.memory_space<vmem>>, vector<1x128xf32>
    %c0_6 = arith.constant 0 : index
    %c0_7 = arith.constant 0 : index
    %c0_8 = arith.constant 0 : index
    %6 = vector.load %arg4[%c0_6, %c0_7, %c0_8] : memref<4x128x128xbf16, #tpu.memory_space<vmem>>, vector<4x128x128xbf16>
    %c0_9 = arith.constant 0 : index
    %c0_10 = arith.constant 0 : index
    %c0_11 = arith.constant 0 : index
    %7 = vector.load %arg1[%c0_9, %c0_10, %c0_11] : memref<1x8x128xf32, #tpu.memory_space<vmem>>, vector<1x8x128xf32>
    %8 = vector.shape_cast %7 : vector<1x8x128xf32> to vector<8x128xf32>
    %c0_12 = arith.constant 0 : index
    %c0_13 = arith.constant 0 : index
    %c0_14 = arith.constant 0 : index
    %9 = vector.load %arg2[%c0_12, %c0_13, %c0_14] : memref<1x8x128xf32, #tpu.memory_space<vmem>>, vector<1x8x128xf32>
    %10 = vector.shape_cast %9 : vector<1x8x128xf32> to vector<8x128xf32>
    %c0_15 = arith.constant 0 : index
    %c0_16 = arith.constant 0 : index
    %c0_17 = arith.constant 0 : index
    %11 = vector.load %arg3[%c0_15, %c0_16, %c0_17] : memref<1x8x128xf32, #tpu.memory_space<vmem>>, vector<1x8x128xf32>
    %12 = vector.shape_cast %11 : vector<1x8x128xf32> to vector<8x128xf32>
    %13 = arith.truncf %8 : vector<8x128xf32> to vector<8x128xbf16>
    %14 = vector.extract_strided_slice %6 {offsets = [0, 0, 0], sizes = [1, 128, 128], strides = [1, 1, 1]} : vector<4x128x128xbf16> to vector<1x128x128xbf16>
    %15 = vector.shape_cast %14 : vector<1x128x128xbf16> to vector<128x128xbf16>
    %cst = arith.constant dense<0.000000e+00> : vector<8x128xf32>
    %16 = tpu.matmul %13, %15, %cst {dimension_numbers = #tpu.dot_dimension_numbers<[1], [0], [0], [1], [0, 0, 1, 1], [], []>} : vector<8x128xbf16>, vector<128x128xbf16>, vector<8x128xf32> -> vector<8x128xf32>
    %17 = vector.broadcast %0 : vector<1x128xf32> to vector<8x128xf32>
    %18 = arith.addf %16, %17 : vector<8x128xf32>
    %19 = arith.truncf %10 : vector<8x128xf32> to vector<8x128xbf16>
    %20 = vector.extract_strided_slice %6 {offsets = [1, 0, 0], sizes = [1, 128, 128], strides = [1, 1, 1]} : vector<4x128x128xbf16> to vector<1x128x128xbf16>
    %21 = vector.shape_cast %20 : vector<1x128x128xbf16> to vector<128x128xbf16>
    %cst_18 = arith.constant dense<0.000000e+00> : vector<8x128xf32>
    %22 = tpu.matmul %19, %21, %cst_18 {dimension_numbers = #tpu.dot_dimension_numbers<[1], [0], [0], [1], [0, 0, 1, 1], [], []>} : vector<8x128xbf16>, vector<128x128xbf16>, vector<8x128xf32> -> vector<8x128xf32>
    %23 = vector.broadcast %1 : vector<1x128xf32> to vector<8x128xf32>
    %24 = arith.addf %22, %23 : vector<8x128xf32>
    %25 = arith.truncf %12 : vector<8x128xf32> to vector<8x128xbf16>
    %26 = vector.extract_strided_slice %6 {offsets = [2, 0, 0], sizes = [1, 128, 128], strides = [1, 1, 1]} : vector<4x128x128xbf16> to vector<1x128x128xbf16>
    %27 = vector.shape_cast %26 : vector<1x128x128xbf16> to vector<128x128xbf16>
    %cst_19 = arith.constant dense<0.000000e+00> : vector<8x128xf32>
    %28 = tpu.matmul %25, %27, %cst_19 {dimension_numbers = #tpu.dot_dimension_numbers<[1], [0], [0], [1], [0, 0, 1, 1], [], []>} : vector<8x128xbf16>, vector<128x128xbf16>, vector<8x128xf32> -> vector<8x128xf32>
    %29 = vector.broadcast %2 : vector<1x128xf32> to vector<8x128xf32>
    %30 = arith.addf %28, %29 : vector<8x128xf32>
    %31 = vector.shape_cast %18 : vector<8x128xf32> to vector<1x8x128xf32>
    %32 = vector.shape_cast %24 : vector<8x128xf32> to vector<1x8x128xf32>
    %33 = vector.shape_cast %30 : vector<8x128xf32> to vector<1x8x128xf32>
    %34 = vector.extract_strided_slice %31 {offsets = [0, 0, 0], sizes = [1, 8, 32], strides = [1, 1, 1]} : vector<1x8x128xf32> to vector<1x8x32xf32>
    %35 = arith.truncf %34 : vector<1x8x32xf32> to vector<1x8x32xbf16>
    %36 = vector.extract_strided_slice %32 {offsets = [0, 0, 0], sizes = [1, 8, 32], strides = [1, 1, 1]} : vector<1x8x128xf32> to vector<1x8x32xf32>
    %37 = arith.truncf %36 : vector<1x8x32xf32> to vector<1x8x32xbf16>
    "tpu.trace_start"() <{level = 10 : i32, message = "bqd,bkd->bqk"}> : () -> ()
    %cst_20 = arith.constant dense<0.000000e+00> : vector<1x8x8xf32>
    %38 = tpu.matmul %35, %37, %cst_20 {dimension_numbers = #tpu.dot_dimension_numbers<[2], [2], [1], [1], [0, 0, 0, 1, 1, 1], [0], [0]>} : vector<1x8x32xbf16>, vector<1x8x32xbf16>, vector<1x8x8xf32> -> vector<1x8x8xf32>
    "tpu.trace_stop"() : () -> ()
    %cst_21 = arith.constant dense<0xFF800000> : vector<1x8xf32>
    %39 = vector.multi_reduction <maximumf>, %38, %cst_21 [2] : vector<1x8x8xf32> to vector<1x8xf32>
    %40 = vector.shape_cast %39 : vector<1x8xf32> to vector<1x8x1xf32>
    %41 = vector.broadcast %40 : vector<1x8x1xf32> to vector<1x8x8xf32>
    %42 = arith.subf %38, %41 : vector<1x8x8xf32>
    %43 = math.exp %42 : vector<1x8x8xf32>
    %cst_22 = arith.constant dense<0.000000e+00> : vector<1x8xf32>
    %44 = vector.multi_reduction <add>, %43, %cst_22 [2] : vector<1x8x8xf32> to vector<1x8xf32>
    %45 = vector.shape_cast %44 : vector<1x8xf32> to vector<1x8x1xf32>
    %46 = tpu.reciprocal %45 {approx = true} : vector<1x8x1xf32> -> vector<1x8x1xf32>
    %47 = vector.broadcast %46 : vector<1x8x1xf32> to vector<1x8x8xf32>
    %48 = arith.mulf %43, %47 : vector<1x8x8xf32>
    %49 = arith.truncf %48 : vector<1x8x8xf32> to vector<1x8x8xbf16>
    %50 = vector.extract_strided_slice %33 {offsets = [0, 0, 0], sizes = [1, 8, 32], strides = [1, 1, 1]} : vector<1x8x128xf32> to vector<1x8x32xf32>
    %51 = arith.truncf %50 : vector<1x8x32xf32> to vector<1x8x32xbf16>
    "tpu.trace_start"() <{level = 10 : i32, message = "bqk,bkd->bqd"}> : () -> ()
    %cst_23 = arith.constant dense<0.000000e+00> : vector<1x8x32xf32>
    %52 = tpu.matmul %49, %51, %cst_23 {dimension_numbers = #tpu.dot_dimension_numbers<[2], [1], [1], [2], [0, 0, 0, 1, 1, 2], [0], [0]>} : vector<1x8x8xbf16>, vector<1x8x32xbf16>, vector<1x8x32xf32> -> vector<1x8x32xf32>
    "tpu.trace_stop"() : () -> ()
    %53 = vector.extract_strided_slice %31 {offsets = [0, 0, 32], sizes = [1, 8, 32], strides = [1, 1, 1]} : vector<1x8x128xf32> to vector<1x8x32xf32>
    %54 = arith.truncf %53 : vector<1x8x32xf32> to vector<1x8x32xbf16>
    %55 = vector.extract_strided_slice %32 {offsets = [0, 0, 32], sizes = [1, 8, 32], strides = [1, 1, 1]} : vector<1x8x128xf32> to vector<1x8x32xf32>
    %56 = arith.truncf %55 : vector<1x8x32xf32> to vector<1x8x32xbf16>
    "tpu.trace_start"() <{level = 10 : i32, message = "bqd,bkd->bqk"}> : () -> ()
    %cst_24 = arith.constant dense<0.000000e+00> : vector<1x8x8xf32>
    %57 = tpu.matmul %54, %56, %cst_24 {dimension_numbers = #tpu.dot_dimension_numbers<[2], [2], [1], [1], [0, 0, 0, 1, 1, 1], [0], [0]>} : vector<1x8x32xbf16>, vector<1x8x32xbf16>, vector<1x8x8xf32> -> vector<1x8x8xf32>
    "tpu.trace_stop"() : () -> ()
    %cst_25 = arith.constant dense<0xFF800000> : vector<1x8xf32>
    %58 = vector.multi_reduction <maximumf>, %57, %cst_25 [2] : vector<1x8x8xf32> to vector<1x8xf32>
    %59 = vector.shape_cast %58 : vector<1x8xf32> to vector<1x8x1xf32>
    %60 = vector.broadcast %59 : vector<1x8x1xf32> to vector<1x8x8xf32>
    %61 = arith.subf %57, %60 : vector<1x8x8xf32>
    %62 = math.exp %61 : vector<1x8x8xf32>
    %cst_26 = arith.constant dense<0.000000e+00> : vector<1x8xf32>
    %63 = vector.multi_reduction <add>, %62, %cst_26 [2] : vector<1x8x8xf32> to vector<1x8xf32>
    %64 = vector.shape_cast %63 : vector<1x8xf32> to vector<1x8x1xf32>
    %65 = tpu.reciprocal %64 {approx = true} : vector<1x8x1xf32> -> vector<1x8x1xf32>
    %66 = vector.broadcast %65 : vector<1x8x1xf32> to vector<1x8x8xf32>
    %67 = arith.mulf %62, %66 : vector<1x8x8xf32>
    %68 = arith.truncf %67 : vector<1x8x8xf32> to vector<1x8x8xbf16>
    %69 = vector.extract_strided_slice %33 {offsets = [0, 0, 32], sizes = [1, 8, 32], strides = [1, 1, 1]} : vector<1x8x128xf32> to vector<1x8x32xf32>
    %70 = arith.truncf %69 : vector<1x8x32xf32> to vector<1x8x32xbf16>
    "tpu.trace_start"() <{level = 10 : i32, message = "bqk,bkd->bqd"}> : () -> ()
    %cst_27 = arith.constant dense<0.000000e+00> : vector<1x8x32xf32>
    %71 = tpu.matmul %68, %70, %cst_27 {dimension_numbers = #tpu.dot_dimension_numbers<[2], [1], [1], [2], [0, 0, 0, 1, 1, 2], [0], [0]>} : vector<1x8x8xbf16>, vector<1x8x32xbf16>, vector<1x8x32xf32> -> vector<1x8x32xf32>
    "tpu.trace_stop"() : () -> ()
    %72 = vector.extract_strided_slice %31 {offsets = [0, 0, 64], sizes = [1, 8, 32], strides = [1, 1, 1]} : vector<1x8x128xf32> to vector<1x8x32xf32>
    %73 = arith.truncf %72 : vector<1x8x32xf32> to vector<1x8x32xbf16>
    %74 = vector.extract_strided_slice %32 {offsets = [0, 0, 64], sizes = [1, 8, 32], strides = [1, 1, 1]} : vector<1x8x128xf32> to vector<1x8x32xf32>
    %75 = arith.truncf %74 : vector<1x8x32xf32> to vector<1x8x32xbf16>
    "tpu.trace_start"() <{level = 10 : i32, message = "bqd,bkd->bqk"}> : () -> ()
    %cst_28 = arith.constant dense<0.000000e+00> : vector<1x8x8xf32>
    %76 = tpu.matmul %73, %75, %cst_28 {dimension_numbers = #tpu.dot_dimension_numbers<[2], [2], [1], [1], [0, 0, 0, 1, 1, 1], [0], [0]>} : vector<1x8x32xbf16>, vector<1x8x32xbf16>, vector<1x8x8xf32> -> vector<1x8x8xf32>
    "tpu.trace_stop"() : () -> ()
    %cst_29 = arith.constant dense<0xFF800000> : vector<1x8xf32>
    %77 = vector.multi_reduction <maximumf>, %76, %cst_29 [2] : vector<1x8x8xf32> to vector<1x8xf32>
    %78 = vector.shape_cast %77 : vector<1x8xf32> to vector<1x8x1xf32>
    %79 = vector.broadcast %78 : vector<1x8x1xf32> to vector<1x8x8xf32>
    %80 = arith.subf %76, %79 : vector<1x8x8xf32>
    %81 = math.exp %80 : vector<1x8x8xf32>
    %cst_30 = arith.constant dense<0.000000e+00> : vector<1x8xf32>
    %82 = vector.multi_reduction <add>, %81, %cst_30 [2] : vector<1x8x8xf32> to vector<1x8xf32>
    %83 = vector.shape_cast %82 : vector<1x8xf32> to vector<1x8x1xf32>
    %84 = tpu.reciprocal %83 {approx = true} : vector<1x8x1xf32> -> vector<1x8x1xf32>
    %85 = vector.broadcast %84 : vector<1x8x1xf32> to vector<1x8x8xf32>
    %86 = arith.mulf %81, %85 : vector<1x8x8xf32>
    %87 = arith.truncf %86 : vector<1x8x8xf32> to vector<1x8x8xbf16>
    %88 = vector.extract_strided_slice %33 {offsets = [0, 0, 64], sizes = [1, 8, 32], strides = [1, 1, 1]} : vector<1x8x128xf32> to vector<1x8x32xf32>
    %89 = arith.truncf %88 : vector<1x8x32xf32> to vector<1x8x32xbf16>
    "tpu.trace_start"() <{level = 10 : i32, message = "bqk,bkd->bqd"}> : () -> ()
    %cst_31 = arith.constant dense<0.000000e+00> : vector<1x8x32xf32>
    %90 = tpu.matmul %87, %89, %cst_31 {dimension_numbers = #tpu.dot_dimension_numbers<[2], [1], [1], [2], [0, 0, 0, 1, 1, 2], [0], [0]>} : vector<1x8x8xbf16>, vector<1x8x32xbf16>, vector<1x8x32xf32> -> vector<1x8x32xf32>
    "tpu.trace_stop"() : () -> ()
    %91 = vector.extract_strided_slice %31 {offsets = [0, 0, 96], sizes = [1, 8, 32], strides = [1, 1, 1]} : vector<1x8x128xf32> to vector<1x8x32xf32>
    %92 = arith.truncf %91 : vector<1x8x32xf32> to vector<1x8x32xbf16>
    %93 = vector.extract_strided_slice %32 {offsets = [0, 0, 96], sizes = [1, 8, 32], strides = [1, 1, 1]} : vector<1x8x128xf32> to vector<1x8x32xf32>
    %94 = arith.truncf %93 : vector<1x8x32xf32> to vector<1x8x32xbf16>
    "tpu.trace_start"() <{level = 10 : i32, message = "bqd,bkd->bqk"}> : () -> ()
    %cst_32 = arith.constant dense<0.000000e+00> : vector<1x8x8xf32>
    %95 = tpu.matmul %92, %94, %cst_32 {dimension_numbers = #tpu.dot_dimension_numbers<[2], [2], [1], [1], [0, 0, 0, 1, 1, 1], [0], [0]>} : vector<1x8x32xbf16>, vector<1x8x32xbf16>, vector<1x8x8xf32> -> vector<1x8x8xf32>
    "tpu.trace_stop"() : () -> ()
    %cst_33 = arith.constant dense<0xFF800000> : vector<1x8xf32>
    %96 = vector.multi_reduction <maximumf>, %95, %cst_33 [2] : vector<1x8x8xf32> to vector<1x8xf32>
    %97 = vector.shape_cast %96 : vector<1x8xf32> to vector<1x8x1xf32>
    %98 = vector.broadcast %97 : vector<1x8x1xf32> to vector<1x8x8xf32>
    %99 = arith.subf %95, %98 : vector<1x8x8xf32>
    %100 = math.exp %99 : vector<1x8x8xf32>
    %cst_34 = arith.constant dense<0.000000e+00> : vector<1x8xf32>
    %101 = vector.multi_reduction <add>, %100, %cst_34 [2] : vector<1x8x8xf32> to vector<1x8xf32>
    %102 = vector.shape_cast %101 : vector<1x8xf32> to vector<1x8x1xf32>
    %103 = tpu.reciprocal %102 {approx = true} : vector<1x8x1xf32> -> vector<1x8x1xf32>
    %104 = vector.broadcast %103 : vector<1x8x1xf32> to vector<1x8x8xf32>
    %105 = arith.mulf %100, %104 : vector<1x8x8xf32>
    %106 = arith.truncf %105 : vector<1x8x8xf32> to vector<1x8x8xbf16>
    %107 = vector.extract_strided_slice %33 {offsets = [0, 0, 96], sizes = [1, 8, 32], strides = [1, 1, 1]} : vector<1x8x128xf32> to vector<1x8x32xf32>
    %108 = arith.truncf %107 : vector<1x8x32xf32> to vector<1x8x32xbf16>
    "tpu.trace_start"() <{level = 10 : i32, message = "bqk,bkd->bqd"}> : () -> ()
    %cst_35 = arith.constant dense<0.000000e+00> : vector<1x8x32xf32>
    %109 = tpu.matmul %106, %108, %cst_35 {dimension_numbers = #tpu.dot_dimension_numbers<[2], [1], [1], [2], [0, 0, 0, 1, 1, 2], [0], [0]>} : vector<1x8x8xbf16>, vector<1x8x32xbf16>, vector<1x8x32xf32> -> vector<1x8x32xf32>
    "tpu.trace_stop"() : () -> ()
    %110 = tpu.concatenate %52, %71, %90, %109 in 2 : vector<1x8x32xf32>, vector<1x8x32xf32>, vector<1x8x32xf32>, vector<1x8x32xf32> -> vector<1x8x128xf32>
    %111 = vector.shape_cast %110 : vector<1x8x128xf32> to vector<8x128xf32>
    %112 = arith.truncf %111 : vector<8x128xf32> to vector<8x128xbf16>
    %113 = vector.extract_strided_slice %6 {offsets = [3, 0, 0], sizes = [1, 128, 128], strides = [1, 1, 1]} : vector<4x128x128xbf16> to vector<1x128x128xbf16>
    %114 = vector.shape_cast %113 : vector<1x128x128xbf16> to vector<128x128xbf16>
    %cst_36 = arith.constant dense<0.000000e+00> : vector<8x128xf32>
    %115 = tpu.matmul %112, %114, %cst_36 {dimension_numbers = #tpu.dot_dimension_numbers<[1], [0], [0], [1], [0, 0, 1, 1], [], []>} : vector<8x128xbf16>, vector<128x128xbf16>, vector<8x128xf32> -> vector<8x128xf32>
    %116 = vector.broadcast %3 : vector<1x128xf32> to vector<8x128xf32>
    %117 = arith.addf %115, %116 : vector<8x128xf32>
    %118 = arith.addf %8, %117 : vector<8x128xf32>
    %cst_37 = arith.constant dense<0.000000e+00> : vector<8xf32>
    %119 = vector.multi_reduction <add>, %118, %cst_37 [1] : vector<8x128xf32> to vector<8xf32>
    %120 = vector.shape_cast %119 : vector<8xf32> to vector<8x1xf32>
    %cst_38 = arith.constant 1.280000e+02 : f32
    %121 = vector.broadcast %cst_38 : f32 to vector<8x1xf32>
    %122 = arith.divf %120, %121 : vector<8x1xf32>
    %123 = arith.mulf %118, %118 : vector<8x128xf32>
    %cst_39 = arith.constant dense<0.000000e+00> : vector<8xf32>
    %124 = vector.multi_reduction <add>, %123, %cst_39 [1] : vector<8x128xf32> to vector<8xf32>
    %125 = vector.shape_cast %124 : vector<8xf32> to vector<8x1xf32>
    %cst_40 = arith.constant 1.280000e+02 : f32
    %126 = vector.broadcast %cst_40 : f32 to vector<8x1xf32>
    %127 = arith.divf %125, %126 : vector<8x1xf32>
    %128 = arith.mulf %122, %122 : vector<8x1xf32>
    %129 = arith.subf %127, %128 : vector<8x1xf32>
    %130 = vector.broadcast %122 : vector<8x1xf32> to vector<8x128xf32>
    %131 = arith.subf %118, %130 : vector<8x128xf32>
    %cst_41 = arith.constant 9.99999974E-6 : f32
    %132 = vector.broadcast %cst_41 : f32 to vector<8x1xf32>
    %133 = arith.addf %129, %132 : vector<8x1xf32>
    %134 = math.rsqrt %133 : vector<8x1xf32>
    %135 = vector.broadcast %134 : vector<8x1xf32> to vector<8x128xf32>
    %136 = arith.mulf %131, %135 : vector<8x128xf32>
    %137 = vector.broadcast %4 : vector<1x128xf32> to vector<8x128xf32>
    %138 = arith.mulf %136, %137 : vector<8x128xf32>
    %139 = vector.broadcast %5 : vector<1x128xf32> to vector<8x128xf32>
    %140 = arith.addf %138, %139 : vector<8x128xf32>
    %141 = vector.shape_cast %140 : vector<8x128xf32> to vector<1x8x128xf32>
    %c0_42 = arith.constant 0 : index
    %c0_43 = arith.constant 0 : index
    %c0_44 = arith.constant 0 : index
    %142 = vector.load %arg6[%c0_42, %c0_43, %c0_44] : memref<1x8x128xf32, #tpu.memory_space<vmem>>, vector<1x8x128xf32>
    tpu.vector_store %arg6[%c0_42, %c0_43, %c0_44], %141 {strides = array<i32>} : memref<1x8x128xf32, #tpu.memory_space<vmem>>, vector<1x8x128xf32>,
    return
  }
  func.func @transform_0(%arg0: i32) -> (i32, i32, i32) {
    %c0_i32 = arith.constant 0 : i32
    %c0_i32_0 = arith.constant 0 : i32
    %c0_i32_1 = arith.constant 0 : i32
    return %arg0, %c0_i32, %c0_i32_0 : i32, i32, i32
  }
  func.func @transform_1(%arg0: i32) -> (i32, i32, i32) {
    %c0_i32 = arith.constant 0 : i32
    %c0_i32_0 = arith.constant 0 : i32
    %c0_i32_1 = arith.constant 0 : i32
    return %arg0, %c0_i32, %c0_i32_0 : i32, i32, i32
  }
  func.func @transform_2(%arg0: i32) -> (i32, i32, i32) {
    %c0_i32 = arith.constant 0 : i32
    %c0_i32_0 = arith.constant 0 : i32
    %c0_i32_1 = arith.constant 0 : i32
    return %arg0, %c0_i32, %c0_i32_0 : i32, i32, i32
  }
  func.func @transform_3(%arg0: i32) -> (i32, i32, i32) {
    %c0_i32 = arith.constant 0 : i32
    %c0_i32_0 = arith.constant 0 : i32
    %c0_i32_1 = arith.constant 0 : i32
    %c0_i32_2 = arith.constant 0 : i32
    return %c0_i32, %c0_i32_0, %c0_i32_1 : i32, i32, i32
  }
  func.func @transform_4(%arg0: i32) -> (i32, i32) {
    %c0_i32 = arith.constant 0 : i32
    %c0_i32_0 = arith.constant 0 : i32
    %c0_i32_1 = arith.constant 0 : i32
    return %c0_i32, %c0_i32_0 : i32, i32
  }
  func.func @transform_5(%arg0: i32) -> (i32, i32, i32) {
    %c0_i32 = arith.constant 0 : i32
    %c0_i32_0 = arith.constant 0 : i32
    %c0_i32_1 = arith.constant 0 : i32
    return %arg0, %c0_i32, %c0_i32_0 : i32, i32, i32
  }
}

</mosaic_0001>

<llo_original>
// kernel: tpu_custom_call.1
$region0: #{tpu_custom_call.1}
  #allocation0 [shape = 'u32[]', space=smem, size = 0x4, offset = 0x4, fixed_abs, tag = 'smem constant byte address 0x4 - core index']
  #allocation1 [shape = 'u32[72,128]{1,0:T(1,128)}', space=vmem, size = 0x9000, scoped, tag = 'internal scratch']
  %s0 = inlined_call_operand.hbm [shape: f32[2,8,128], index: 0, kind: input, shape index: {}]
  %s1 = inlined_call_operand.hbm [shape: f32[2,8,128], index: 1, kind: input, shape index: {}]
  %s2 = inlined_call_operand.hbm [shape: f32[2,8,128], index: 2, kind: input, shape index: {}]
  %s3 = inlined_call_operand.hbm [shape: bf16[4,128,128], index: 3, kind: input, shape index: {}]
  %s4 = inlined_call_operand.hbm [shape: f32[8,128], index: 4, kind: input, shape index: {}]
  %s5 = inlined_call_operand.hbm [shape: f32[2,8,128], index: 5, kind: output, shape index: {}]
  %s6 = sld [smem:[#allocation0]]
  $region73: #{tpu_custom_call.1} parent=0
    _
  %s8 = ssub.s32 1, %s6
  %s9 = scalar_select 0, %s8, %s6
  $region1: #{tpu_custom_call.1} parent=0
    #allocation2 [shape = 'u8[8192]{0}', space=vmem, size = 0x2000, scoped, tag = 'input window, operand 0']
    #allocation3 [shape = 's32[2]{0}', space=sflag, size = 0x8, scoped, tag = 'scoped memory for tpu_custom_call.1']
    #allocation4 [shape = 's32[2]{0}', space=sflag, size = 0x8, scoped, tag = 'scoped memory for tpu_custom_call.1']
    #allocation5 [shape = 'u8[8192]{0}', space=vmem, size = 0x2000, scoped, tag = 'input window, operand 1']
    #allocation6 [shape = 's32[2]{0}', space=sflag, size = 0x8, scoped, tag = 'scoped memory for tpu_custom_call.1']
    #allocation7 [shape = 'u8[8192]{0}', space=vmem, size = 0x2000, scoped, tag = 'input window, operand 2']
    #allocation8 [shape = 'u8[131072]{0}', space=vmem, size = 0x20000, scoped, tag = 'input window, operand 3, single buffered']
    #allocation9 [shape = 's32[1]{0}', space=sflag, size = 0x4, scoped, tag = 'scoped memory for tpu_custom_call.1']
    #allocation10 [shape = 'u8[4096]{0}', space=vmem, size = 0x1000, scoped, tag = 'input window, operand 4, single buffered']
    #allocation11 [shape = 'u8[8192]{0}', space=vmem, size = 0x2000, scoped, tag = 'output window, operand 0']
    %10 = vsyncpa [#allocation3], 0
    %s11 = scalar_lea.sflag [#allocation3], 1
    %12 = vsyncpa %s11, 0
    %13 = vsyncpa [#allocation6], 0
    %s14 = scalar_lea.sflag [#allocation6], 1
    %15 = vsyncpa %s14, 0
    %16 = vsyncpa [#allocation9], 0
    %17 = vsyncpa [#allocation4], 0
    %s18 = scalar_lea.sflag [#allocation4], 1
    %19 = vsyncpa %s18, 0
    loop: start=0, step=1, limit=4
    $region2: #{tpu_custom_call.1} parent=1 // loop_pre_header
      _
    $region3: #{tpu_custom_call.1} parent=1 // loop_header
      %s21 = sphi 0, %s25
      %p22 = scmp.ge.s32.totalorder %s21, 4
      %s31 = sphi 0, %s33
      %s34 = sphi 0, %s31
      %s35 = sphi 0, %s34
      %s51 = sphi 0, %s35
      %s57 = sphi 0, %s59
      %s60 = sphi 0, %s57
      %s61 = sphi 0, %s60
      %s77 = sphi 0, %s61
      %s83 = sphi 0, %s85
      %s86 = sphi 0, %s83
      %s87 = sphi 0, %s86
      %s103 = sphi 0, %s87
      %s107 = sphi 0, %s107
      %s109 = sphi 0, %s107
      %s110 = sphi 0, %s109
      %s124 = sphi 0, %s110
      %s128 = sphi 0, %s128
      %s130 = sphi 0, %s128
      %s131 = sphi 0, %s130
      %s145 = sphi 0, %s131
      %s151 = sphi 0, %s153
      %s154 = sphi 0, %s151
      %s155 = sphi 0, %s154
      %s171 = sphi 0, %s155
    $region4: #{tpu_custom_call.1} parent=1 // loop_header_branch
      %24 = sbr.rel (%p22) target = $region8
    $region5: #{tpu_custom_call.1} parent=1 // loop_body
      %s26 = ssub.s32 %s21, 1
      %s27 = ssub.s32 %s21, 2
      %s28 = sadd.s32 %s21, 1
      %s29 = ssub.s32 %s21, %s28
      %p30 = scmp.eq.s32.totalorder %s29, 0
      %s32 = sadd.s32 %s31, 1
      %s33 = scalar_select %p30, %s31, %s32
      %p36 = pneg %p30
      %p37 = scmp.eq.s32.totalorder %s21, 1
      %p38 = por %p36, %p37
      %p39 = scmp.ne.s32.totalorder %s31, %s34
      %p40 = scmp.eq.s32.totalorder %s21, 0
      %p41 = por %p39, %p40
      %p42 = scmp.ne.s32.totalorder %s31, %s34
      %p43 = scmp.eq.s32.totalorder %s26, 1
      %p44 = por %p42, %p43
      %p45 = scmp.ne.s32.totalorder %s34, %s35
      %p46 = scmp.eq.s32.totalorder %s26, 0
      %p47 = por %p45, %p46
      %p48 = scmp.ne.s32.totalorder %s34, %s35
      %p49 = scmp.eq.s32.totalorder %s27, 1
      %p50 = por %p48, %p49
      %p52 = scmp.ne.s32.totalorder %s35, %s51
      %p53 = scmp.eq.s32.totalorder %s27, 0
      %p54 = por %p52, %p53
      %s55 = ssub.s32 %s21, %s28
      %p56 = scmp.eq.s32.totalorder %s55, 0
      %s58 = sadd.s32 %s57, 1
      %s59 = scalar_select %p56, %s57, %s58
      %p62 = pneg %p56
      %p63 = scmp.eq.s32.totalorder %s21, 1
      %p64 = por %p62, %p63
      %p65 = scmp.ne.s32.totalorder %s57, %s60
      %p66 = scmp.eq.s32.totalorder %s21, 0
      %p67 = por %p65, %p66
      %p68 = scmp.ne.s32.totalorder %s57, %s60
      %p69 = scmp.eq.s32.totalorder %s26, 1
      %p70 = por %p68, %p69
      %p71 = scmp.ne.s32.totalorder %s60, %s61
      %p72 = scmp.eq.s32.totalorder %s26, 0
      %p73 = por %p71, %p72
      %p74 = scmp.ne.s32.totalorder %s60, %s61
      %p75 = scmp.eq.s32.totalorder %s27, 1
      %p76 = por %p74, %p75
      %p78 = scmp.ne.s32.totalorder %s61, %s77
      %p79 = scmp.eq.s32.totalorder %s27, 0
      %p80 = por %p78, %p79
      %s81 = ssub.s32 %s21, %s28
      %p82 = scmp.eq.s32.totalorder %s81, 0
      %s84 = sadd.s32 %s83, 1
      %s85 = scalar_select %p82, %s83, %s84
      %p88 = pneg %p82
      %p89 = scmp.eq.s32.totalorder %s21, 1
      %p90 = por %p88, %p89
      %p91 = scmp.ne.s32.totalorder %s83, %s86
      %p92 = scmp.eq.s32.totalorder %s21, 0
      %p93 = por %p91, %p92
      %p94 = scmp.ne.s32.totalorder %s83, %s86
      %p95 = scmp.eq.s32.totalorder %s26, 1
      %p96 = por %p94, %p95
      %p97 = scmp.ne.s32.totalorder %s86, %s87
      %p98 = scmp.eq.s32.totalorder %s26, 0
      %p99 = por %p97, %p98
      %p100 = scmp.ne.s32.totalorder %s86, %s87
      %p101 = scmp.eq.s32.totalorder %s27, 1
      %p102 = por %p100, %p101
      %p104 = scmp.ne.s32.totalorder %s87, %s103
      %p105 = scmp.eq.s32.totalorder %s27, 0
      %p106 = por %p104, %p105
      %s108 = sadd.s32 %s107, 1
      %p111 = scmp.eq.s32.totalorder %s21, 1
      %p112 = scmp.ne.s32.totalorder %s107, %s109
      %p113 = scmp.eq.s32.totalorder %s21, 0
      %p114 = por %p112, %p113
      %p115 = scmp.ne.s32.totalorder %s107, %s109
      %p116 = scmp.eq.s32.totalorder %s26, 1
      %p117 = por %p115, %p116
      %p118 = scmp.ne.s32.totalorder %s109, %s110
      %p119 = scmp.eq.s32.totalorder %s26, 0
      %p120 = por %p118, %p119
      %p121 = scmp.ne.s32.totalorder %s109, %s110
      %p122 = scmp.eq.s32.totalorder %s27, 1
      %p123 = por %p121, %p122
      %p125 = scmp.ne.s32.totalorder %s110, %s124
      %p126 = scmp.eq.s32.totalorder %s27, 0
      %p127 = por %p125, %p126
      %s129 = sadd.s32 %s128, 1
      %p132 = scmp.eq.s32.totalorder %s21, 1
      %p133 = scmp.ne.s32.totalorder %s128, %s130
      %p134 = scmp.eq.s32.totalorder %s21, 0
      %p135 = por %p133, %p134
      %p136 = scmp.ne.s32.totalorder %s128, %s130
      %p137 = scmp.eq.s32.totalorder %s26, 1
      %p138 = por %p136, %p137
      %p139 = scmp.ne.s32.totalorder %s130, %s131
      %p140 = scmp.eq.s32.totalorder %s26, 0
      %p141 = por %p139, %p140
      %p142 = scmp.ne.s32.totalorder %s130, %s131
      %p143 = scmp.eq.s32.totalorder %s27, 1
      %p144 = por %p142, %p143
      %p146 = scmp.ne.s32.totalorder %s131, %s145
      %p147 = scmp.eq.s32.totalorder %s27, 0
      %p148 = por %p146, %p147
      %s149 = ssub.s32 %s21, %s28
      %p150 = scmp.eq.s32.totalorder %s149, 0
      %s152 = sadd.s32 %s151, 1
      %s153 = scalar_select %p150, %s151, %s152
      %p156 = pneg %p150
      %p157 = scmp.eq.s32.totalorder %s21, 1
      %p158 = por %p156, %p157
      %p159 = scmp.ne.s32.totalorder %s151, %s154
      %p160 = scmp.eq.s32.totalorder %s21, 0
      %p161 = por %p159, %p160
      %p162 = scmp.ne.s32.totalorder %s151, %s154
      %p163 = scmp.eq.s32.totalorder %s26, 1
      %p164 = por %p162, %p163
      %p165 = scmp.ne.s32.totalorder %s154, %s155
      %p166 = scmp.eq.s32.totalorder %s26, 0
      %p167 = por %p165, %p166
      %p168 = scmp.ne.s32.totalorder %s154, %s155
      %p169 = scmp.eq.s32.totalorder %s27, 1
      %p170 = por %p168, %p169
      %p172 = scmp.ne.s32.totalorder %s155, %s171
      %p173 = scmp.eq.s32.totalorder %s27, 0
      %p174 = por %p172, %p173
      %p175 = scmp.le.s32.totalorder 1, %s21
      %p176 = scmp.lt.s32.totalorder %s21, 3
      %p177 = pnand %p175, %p176
      %p178 = pneg %p177
      // Predicated region
      $region9: #{tpu_custom_call.1} parent=5 // pred_check
        _
      $region10: #{tpu_custom_call.1} parent=5 // pred_check_branch
        %180 = sbr.rel (%p177) target = $region12
      $region11: #{tpu_custom_call.1} parent=5 // pred_region
        %s181 = ssub.s32 %s21, 1
        // Predicated region
        $region13: #{tpu_custom_call.1} parent=11 // pred_check
          %p182 = pneg %p120
        $region14: #{tpu_custom_call.1} parent=11 // pred_check_branch
          %184 = sbr.rel (%p182) target = $region16
        $region15: #{tpu_custom_call.1} parent=11 // pred_region
          %186 = vsyncadd [#allocation9], 0
          %s187 = sshll.u32 %s3, 4
          %s188 = int_to_ptr.hbm [resolvable:$true] %s187
          %s189 = sshll.u32 [#allocation8], 4
          %s190 = int_to_ptr.vmem [resolvable:$true] %s189
          %195 = dma.hbm_to_vmem [thread:$0]  %s188, 4096, %s190, [#allocation9], 64, 64, 4
        $region16: #{tpu_custom_call.1} parent=11 // pred_fallthru
          _
        // Predicated region
        $region17: #{tpu_custom_call.1} parent=11 // pred_check
          %p196 = pneg %p141
        $region18: #{tpu_custom_call.1} parent=11 // pred_check_branch
          %198 = sbr.rel (%p196) target = $region20
        $region19: #{tpu_custom_call.1} parent=11 // pred_region
          %200 = vsyncadd [#allocation9], 0
          %s202 = sshll.u32 %s4, 4
          %s203 = int_to_ptr.hbm [resolvable:$true] %s202
          %s204 = sshll.u32 [#allocation10], 4
          %s205 = int_to_ptr.vmem [resolvable:$true] %s204
          %207 = dma.hbm_to_vmem [thread:$0]  %s203, 128, %s205, [#allocation9]
        $region20: #{tpu_custom_call.1} parent=11 // pred_fallthru
          _
      $region12: #{tpu_custom_call.1} parent=5 // pred_fallthru
        _
      %p208 = scmp.lt.s32.totalorder %s21, 2
      // Predicated region
      $region21: #{tpu_custom_call.1} parent=5 // pred_check
        %p209 = pneg %p208
      $region22: #{tpu_custom_call.1} parent=5 // pred_check_branch
        %211 = sbr.rel (%p209) target = $region24
      $region23: #{tpu_custom_call.1} parent=5 // pred_region
        // Predicated region
        $region25: #{tpu_custom_call.1} parent=23 // pred_check
          %p212 = pneg %p41
        $region26: #{tpu_custom_call.1} parent=23 // pred_check_branch
          %214 = sbr.rel (%p212) target = $region28
        $region27: #{tpu_custom_call.1} parent=23 // pred_region
          %s215 = sand.u32 %s31, 1
          %s216 = scalar_lea.sflag [#allocation3], %s215
          %s217 = sand.u32 %s31, 1
          %s218 = smul.addr %s217, 8
          %s219 = scalar_lea.vmem [#allocation2], %s218
          %221 = vsyncadd %s216, 0
          %s222 = smul.addr %s21, 8
          %s223 = scalar_lea.hbm %s0, %s222
          %s225 = sshll.u32 %s223, 4
          %s226 = int_to_ptr.hbm [resolvable:$true] %s225
          %s227 = sshll.u32 %s219, 4
          %s228 = int_to_ptr.vmem [resolvable:$true] %s227
          %230 = dma.hbm_to_vmem [thread:$0]  %s226, 128, %s228, %s216
        $region28: #{tpu_custom_call.1} parent=23 // pred_fallthru
          _
        // Predicated region
        $region29: #{tpu_custom_call.1} parent=23 // pred_check
          %p231 = pneg %p67
        $region30: #{tpu_custom_call.1} parent=23 // pred_check_branch
          %233 = sbr.rel (%p231) target = $region32
        $region31: #{tpu_custom_call.1} parent=23 // pred_region
          %s234 = sand.u32 %s21, 1
          %s235 = scalar_lea.sflag [#allocation6], %s234
          %s236 = sand.u32 %s57, 1
          %s237 = smul.addr %s236, 8
          %s238 = scalar_lea.vmem [#allocation5], %s237
          %240 = vsyncadd %s235, 0
          %s241 = smul.addr %s21, 8
          %s242 = scalar_lea.hbm %s1, %s241
          %s244 = sshll.u32 %s242, 4
          %s245 = int_to_ptr.hbm [resolvable:$true] %s244
          %s246 = sshll.u32 %s238, 4
          %s247 = int_to_ptr.vmem [resolvable:$true] %s246
          %249 = dma.hbm_to_vmem [thread:$0]  %s245, 128, %s247, %s235
        $region32: #{tpu_custom_call.1} parent=23 // pred_fallthru
          _
        // Predicated region
        $region33: #{tpu_custom_call.1} parent=23 // pred_check
          %p250 = pneg %p93
        $region34: #{tpu_custom_call.1} parent=23 // pred_check_branch
          %252 = sbr.rel (%p250) target = $region36
        $region35: #{tpu_custom_call.1} parent=23 // pred_region
          %s253 = sand.u32 %s21, 1
          %s254 = scalar_lea.sflag [#allocation6], %s253
          %s255 = sand.u32 %s83, 1
          %s256 = smul.addr %s255, 8
          %s257 = scalar_lea.vmem [#allocation7], %s256
          %259 = vsyncadd %s254, 0
          %s260 = smul.addr %s21, 8
          %s261 = scalar_lea.hbm %s2, %s260
          %s263 = sshll.u32 %s261, 4
          %s264 = int_to_ptr.hbm [resolvable:$true] %s263
          %s265 = sshll.u32 %s257, 4
          %s266 = int_to_ptr.vmem [resolvable:$true] %s265
          %268 = dma.hbm_to_vmem [thread:$0]  %s264, 128, %s266, %s254
        $region36: #{tpu_custom_call.1} parent=23 // pred_fallthru
          _
      $region24: #{tpu_custom_call.1} parent=5 // pred_fallthru
        _
      %p269 = scmp.le.s32.totalorder 1, %s21
      %p270 = scmp.lt.s32.totalorder %s21, 3
      %p271 = pnand %p269, %p270
      %p272 = pneg %p271
      // Predicated region
      $region37: #{tpu_custom_call.1} parent=5 // pred_check
        _
      $region38: #{tpu_custom_call.1} parent=5 // pred_check_branch
        %274 = sbr.rel (%p271) target = $region40
      $region39: #{tpu_custom_call.1} parent=5 // pred_region
        %s275 = ssub.s32 %s21, 1
        %s276 = sand.u32 %s34, 1
        %s277 = scalar_lea.sflag [#allocation3], %s276
        %s278 = sand.u32 %s34, 1
        %s279 = smul.addr %s278, 8
        %s280 = scalar_lea.vmem [#allocation2], %s279
        // Predicated region
        $region41: #{tpu_custom_call.1} parent=39 // pred_check
          %p281 = pneg %p47
        $region42: #{tpu_custom_call.1} parent=39 // pred_check_branch
          %283 = sbr.rel (%p281) target = $region44
        $region43: #{tpu_custom_call.1} parent=39 // pred_region
          %285 = dma.done %s277, 128
        $region44: #{tpu_custom_call.1} parent=39 // pred_fallthru
          _
        %s286 = sand.u32 %s26, 1
        %s287 = scalar_lea.sflag [#allocation6], %s286
        %s288 = sand.u32 %s60, 1
        %s289 = smul.addr %s288, 8
        %s290 = scalar_lea.vmem [#allocation5], %s289
        // Predicated region
        $region45: #{tpu_custom_call.1} parent=39 // pred_check
          %p291 = pneg %p73
        $region46: #{tpu_custom_call.1} parent=39 // pred_check_branch
          %293 = sbr.rel (%p291) target = $region48
        $region47: #{tpu_custom_call.1} parent=39 // pred_region
          %295 = dma.done %s287, 128
        $region48: #{tpu_custom_call.1} parent=39 // pred_fallthru
          _
        %s296 = sand.u32 %s26, 1
        %s297 = scalar_lea.sflag [#allocation6], %s296
        %s298 = sand.u32 %s86, 1
        %s299 = smul.addr %s298, 8
        %s300 = scalar_lea.vmem [#allocation7], %s299
        // Predicated region
        $region49: #{tpu_custom_call.1} parent=39 // pred_check
          %p301 = pneg %p99
        $region50: #{tpu_custom_call.1} parent=39 // pred_check_branch
          %303 = sbr.rel (%p301) target = $region52
        $region51: #{tpu_custom_call.1} parent=39 // pred_region
          %305 = dma.done %s297, 128
        $region52: #{tpu_custom_call.1} parent=39 // pred_fallthru
          _
        // Predicated region
        $region53: #{tpu_custom_call.1} parent=39 // pred_check
          %p306 = pneg %p120
        $region54: #{tpu_custom_call.1} parent=39 // pred_check_branch
          %308 = sbr.rel (%p306) target = $region56
        $region55: #{tpu_custom_call.1} parent=39 // pred_region
          %310 = dma.done [#allocation9], 4096
        $region56: #{tpu_custom_call.1} parent=39 // pred_fallthru
          _
        // Predicated region
        $region57: #{tpu_custom_call.1} parent=39 // pred_check
          %p311 = pneg %p141
        $region58: #{tpu_custom_call.1} parent=39 // pred_check_branch
          %313 = sbr.rel (%p311) target = $region60
        $region59: #{tpu_custom_call.1} parent=39 // pred_region
          %315 = dma.done [#allocation9], 128
        $region60: #{tpu_custom_call.1} parent=39 // pred_fallthru
          _
        %s316 = sand.u32 %s34, 1
        %s317 = scalar_lea.sflag [#allocation3], %s316
        %s318 = sand.u32 %s34, 1
        %s319 = smul.addr %s318, 8
        %s320 = scalar_lea.vmem [#allocation2], %s319
        %p321 = pneg %p47
        %p322 = pneg %p44
        %s323 = sand.u32 %s26, 1
        %s324 = scalar_lea.sflag [#allocation6], %s323
        %s325 = sand.u32 %s60, 1
        %s326 = smul.addr %s325, 8
        %s327 = scalar_lea.vmem [#allocation5], %s326
        %p328 = pneg %p73
        %p329 = pneg %p70
        %s330 = sand.u32 %s26, 1
        %s331 = scalar_lea.sflag [#allocation6], %s330
        %s332 = sand.u32 %s86, 1
        %s333 = smul.addr %s332, 8
        %s334 = scalar_lea.vmem [#allocation7], %s333
        %p335 = pneg %p99
        %p336 = pneg %p96
        %p337 = pneg %p120
        %p338 = pneg %p117
        %p339 = pneg %p141
        %p340 = pneg %p138
        %p341 = pneg %p167
        %p342 = pneg %p164
        %s343 = sand.u32 %s154, 1
        %s344 = scalar_lea.sflag [#allocation4], %s343
        %s345 = sand.u32 %s154, 1
        %s346 = smul.addr %s345, 8
        %s347 = scalar_lea.vmem [#allocation11], %s346
        %v349 = vld [vmem:[#allocation10] sm:$0x1]
        %v350 = vld [vmem:[#allocation10 + $0x1] sm:$0x1]
        %v351 = vld [vmem:[#allocation10 + $0x2] sm:$0x1]
        %v352 = vld [vmem:[#allocation10 + $0x3] sm:$0x1]
        %v353 = vld [vmem:[#allocation10 + $0x4] sm:$0x1]
        %v354 = vld [vmem:[#allocation10 + $0x5] sm:$0x1]
        %v355 = vld [vmem:[#allocation8] sm:$0xf]
        %v356 = vld [vmem:[#allocation8 + $0x4] sm:$0xf]
        %v357 = vld [vmem:[#allocation8 + $0x8] sm:$0xf]
        %v358 = vld [vmem:[#allocation8 + $0xc] sm:$0xf]
        %v359 = vld [vmem:[#allocation8 + $0x10] sm:$0xf]
        %v360 = vld [vmem:[#allocation8 + $0x14] sm:$0xf]
        %v361 = vld [vmem:[#allocation8 + $0x18] sm:$0xf]
        %v362 = vld [vmem:[#allocation8 + $0x1c] sm:$0xf]
        %v363 = vld [vmem:[#allocation8 + $0x20] sm:$0xf]
        %v364 = vld [vmem:[#allocation8 + $0x24] sm:$0xf]
        %v365 = vld [vmem:[#allocation8 + $0x28] sm:$0xf]
        %v366 = vld [vmem:[#allocation8 + $0x2c] sm:$0xf]
        %v367 = vld [vmem:[#allocation8 + $0x30] sm:$0xf]
        %v368 = vld [vmem:[#allocation8 + $0x34] sm:$0xf]
        %v369 = vld [vmem:[#allocation8 + $0x38] sm:$0xf]
        %v370 = vld [vmem:[#allocation8 + $0x3c] sm:$0xf]
        %v371 = vld [vmem:[#allocation8 + $0x40] sm:$0xf]
        %v372 = vld [vmem:[#allocation8 + $0x44] sm:$0xf]
        %v373 = vld [vmem:[#allocation8 + $0x48] sm:$0xf]
        %v374 = vld [vmem:[#allocation8 + $0x4c] sm:$0xf]
        %v375 = vld [vmem:[#allocation8 + $0x50] sm:$0xf]
        %v376 = vld [vmem:[#allocation8 + $0x54] sm:$0xf]
        %v377 = vld [vmem:[#allocation8 + $0x58] sm:$0xf]
        %v378 = vld [vmem:[#allocation8 + $0x5c] sm:$0xf]
        %v379 = vld [vmem:[#allocation8 + $0x60] sm:$0xf]
        %v380 = vld [vmem:[#allocation8 + $0x64] sm:$0xf]
        %v381 = vld [vmem:[#allocation8 + $0x68] sm:$0xf]
        %v382 = vld [vmem:[#allocation8 + $0x6c] sm:$0xf]
        %v383 = vld [vmem:[#allocation8 + $0x70] sm:$0xf]
        %v384 = vld [vmem:[#allocation8 + $0x74] sm:$0xf]
        %v385 = vld [vmem:[#allocation8 + $0x78] sm:$0xf]
        %v386 = vld [vmem:[#allocation8 + $0x7c] sm:$0xf]
        %v387 = vld [vmem:[#allocation8 + $0x80] sm:$0xf]
        %v388 = vld [vmem:[#allocation8 + $0x84] sm:$0xf]
        %v389 = vld [vmem:[#allocation8 + $0x88] sm:$0xf]
        %v390 = vld [vmem:[#allocation8 + $0x8c] sm:$0xf]
        %v391 = vld [vmem:[#allocation8 + $0x90] sm:$0xf]
        %v392 = vld [vmem:[#allocation8 + $0x94] sm:$0xf]
        %v393 = vld [vmem:[#allocation8 + $0x98] sm:$0xf]
        %v394 = vld [vmem:[#allocation8 + $0x9c] sm:$0xf]
        %v395 = vld [vmem:[#allocation8 + $0xa0] sm:$0xf]
        %v396 = vld [vmem:[#allocation8 + $0xa4] sm:$0xf]
        %v397 = vld [vmem:[#allocation8 + $0xa8] sm:$0xf]
        %v398 = vld [vmem:[#allocation8 + $0xac] sm:$0xf]
        %v399 = vld [vmem:[#allocation8 + $0xb0] sm:$0xf]
        %v400 = vld [vmem:[#allocation8 + $0xb4] sm:$0xf]
        %v401 = vld [vmem:[#allocation8 + $0xb8] sm:$0xf]
        %v402 = vld [vmem:[#allocation8 + $0xbc] sm:$0xf]
        %v403 = vld [vmem:[#allocation8 + $0xc0] sm:$0xf]
        %v404 = vld [vmem:[#allocation8 + $0xc4] sm:$0xf]
        %v405 = vld [vmem:[#allocation8 + $0xc8] sm:$0xf]
        %v406 = vld [vmem:[#allocation8 + $0xcc] sm:$0xf]
        %v407 = vld [vmem:[#allocation8 + $0xd0] sm:$0xf]
        %v408 = vld [vmem:[#allocation8 + $0xd4] sm:$0xf]
        %v409 = vld [vmem:[#allocation8 + $0xd8] sm:$0xf]
        %v410 = vld [vmem:[#allocation8 + $0xdc] sm:$0xf]
        %v411 = vld [vmem:[#allocation8 + $0xe0] sm:$0xf]
        %v412 = vld [vmem:[#allocation8 + $0xe4] sm:$0xf]
        %v413 = vld [vmem:[#allocation8 + $0xe8] sm:$0xf]
        %v414 = vld [vmem:[#allocation8 + $0xec] sm:$0xf]
        %v415 = vld [vmem:[#allocation8 + $0xf0] sm:$0xf]
        %v416 = vld [vmem:[#allocation8 + $0xf4] sm:$0xf]
        %v417 = vld [vmem:[#allocation8 + $0xf8] sm:$0xf]
        %v418 = vld [vmem:[#allocation8 + $0xfc] sm:$0xf]
        %v419 = vld [vmem:[%s280] sm:$0xff]
        %v420 = vld [vmem:[%s290] sm:$0xff]
        %v421 = vld [vmem:[%s300] sm:$0xff]
        %v422 = vpack.c.bf16 %v419, %v419
        %v423 = vperm.slane %v349, 0
        %v440 = vunpack.c.l.b16 %v355
        %v441 = vunpack.c.l.b16 %v356
        %v442 = vunpack.c.l.b16 %v357
        %v443 = vunpack.c.l.b16 %v358
        %v444 = vunpack.c.l.b16 %v359
        %v445 = vunpack.c.l.b16 %v360
        %v446 = vunpack.c.l.b16 %v361
        %v447 = vunpack.c.l.b16 %v362
        %v448 = vunpack.c.l.b16 %v363
        %v449 = vunpack.c.l.b16 %v364
        %v450 = vunpack.c.l.b16 %v365
        %v451 = vunpack.c.l.b16 %v366
        %v452 = vunpack.c.l.b16 %v367
        %v453 = vunpack.c.l.b16 %v368
        %v454 = vunpack.c.l.b16 %v369
        %v455 = vunpack.c.l.b16 %v370
        %v456 = vpack.c.b16 %v441, %v440
        %v457 = vpack.c.b16 %v443, %v442
        %v458 = vpack.c.b16 %v445, %v444
        %v459 = vpack.c.b16 %v447, %v446
        %v460 = vpack.c.b16 %v449, %v448
        %v461 = vpack.c.b16 %v451, %v450
        %v462 = vpack.c.b16 %v453, %v452
        %v463 = vpack.c.b16 %v455, %v454
        %472 = vmatpush.bf16.msra.mxu0 %v463
        %473 = vmatpush.bf16.msra.mxu0 %v462
        %474 = vmatpush.bf16.msra.mxu0 %v461
        %475 = vmatpush.bf16.msra.mxu0 %v460
        %476 = vmatpush.bf16.msra.mxu0 %v459
        %477 = vmatpush.bf16.msra.mxu0 %v458
        %478 = vmatpush.bf16.msra.mxu0 %v457
        %479 = vmatpush.bf16.msra.mxu0 %v456
        %480 = vmatmul.bf16.gmra.mxu0 %v422
        %v481 = vpop.f32.mrf.mxu0
        %v482 = vadd.f32 %v423, %v481
        %v483 = vpop.f32.mrf.mxu0
        %484 = vdwg.mxu0
        %v485 = vpack.c.bf16 %v420, %v420
        %v486 = vperm.slane %v350, 0
        %v503 = vunpack.c.l.b16 %v371
        %v504 = vunpack.c.l.b16 %v372
        %v505 = vunpack.c.l.b16 %v373
        %v506 = vunpack.c.l.b16 %v374
        %v507 = vunpack.c.l.b16 %v375
        %v508 = vunpack.c.l.b16 %v376
        %v509 = vunpack.c.l.b16 %v377
        %v510 = vunpack.c.l.b16 %v378
        %v511 = vunpack.c.l.b16 %v379
        %v512 = vunpack.c.l.b16 %v380
        %v513 = vunpack.c.l.b16 %v381
        %v514 = vunpack.c.l.b16 %v382
        %v515 = vunpack.c.l.b16 %v383
        %v516 = vunpack.c.l.b16 %v384
        %v517 = vunpack.c.l.b16 %v385
        %v518 = vunpack.c.l.b16 %v386
        %v519 = vpack.c.b16 %v504, %v503
        %v520 = vpack.c.b16 %v506, %v505
        %v521 = vpack.c.b16 %v508, %v507
        %v522 = vpack.c.b16 %v510, %v509
        %v523 = vpack.c.b16 %v512, %v511
        %v524 = vpack.c.b16 %v514, %v513
        %v525 = vpack.c.b16 %v516, %v515
        %v526 = vpack.c.b16 %v518, %v517
        %535 = vmatpush.bf16.msra.mxu0 %v526
        %536 = vmatpush.bf16.msra.mxu0 %v525
        %537 = vmatpush.bf16.msra.mxu0 %v524
        %538 = vmatpush.bf16.msra.mxu0 %v523
        %539 = vmatpush.bf16.msra.mxu0 %v522
        %540 = vmatpush.bf16.msra.mxu0 %v521
        %541 = vmatpush.bf16.msra.mxu0 %v520
        %542 = vmatpush.bf16.msra.mxu0 %v519
        %543 = vmatmul.bf16.gmra.mxu0 %v485
        %v544 = vpop.f32.mrf.mxu0
        %v545 = vadd.f32 %v486, %v544
        %v546 = vpop.f32.mrf.mxu0
        %547 = vdwg.mxu0
        %v548 = vpack.c.bf16 %v421, %v421
        %v549 = vperm.slane %v351, 0
        %v566 = vunpack.c.l.b16 %v387
        %v567 = vunpack.c.l.b16 %v388
        %v568 = vunpack.c.l.b16 %v389
        %v569 = vunpack.c.l.b16 %v390
        %v570 = vunpack.c.l.b16 %v391
        %v571 = vunpack.c.l.b16 %v392
        %v572 = vunpack.c.l.b16 %v393
        %v573 = vunpack.c.l.b16 %v394
        %v574 = vunpack.c.l.b16 %v395
        %v575 = vunpack.c.l.b16 %v396
        %v576 = vunpack.c.l.b16 %v397
        %v577 = vunpack.c.l.b16 %v398
        %v578 = vunpack.c.l.b16 %v399
        %v579 = vunpack.c.l.b16 %v400
        %v580 = vunpack.c.l.b16 %v401
        %v581 = vunpack.c.l.b16 %v402
        %v582 = vpack.c.b16 %v567, %v566
        %v583 = vpack.c.b16 %v569, %v568
        %v584 = vpack.c.b16 %v571, %v570
        %v585 = vpack.c.b16 %v573, %v572
        %v586 = vpack.c.b16 %v575, %v574
        %v587 = vpack.c.b16 %v577, %v576
        %v588 = vpack.c.b16 %v579, %v578
        %v589 = vpack.c.b16 %v581, %v580
        %598 = vmatpush.bf16.msra.mxu0 %v589
        %599 = vmatpush.bf16.msra.mxu0 %v588
        %600 = vmatpush.bf16.msra.mxu0 %v587
        %601 = vmatpush.bf16.msra.mxu0 %v586
        %602 = vmatpush.bf16.msra.mxu0 %v585
        %603 = vmatpush.bf16.msra.mxu0 %v584
        %604 = vmatpush.bf16.msra.mxu0 %v583
        %605 = vmatpush.bf16.msra.mxu0 %v582
        %606 = vmatmul.bf16.gmra.mxu0 %v548
        %v607 = vpop.f32.mrf.mxu0
        %v608 = vadd.f32 %v549, %v607
        %v609 = vpop.f32.mrf.mxu0
        %610 = vdwg.mxu0
        %v611 = vpack.c.bf16 %v482, %v482
        %v612 = vpack.c.bf16 %v545, %v545
        %vm613 = vcmask 261120
        %v615 = vsel %vm613, %v611, 0
        %v618 = vsel %vm613, %v612, 0
        %620 = vmatpush.bf16.xpose.msra.mxu0 0
        %621 = vmatpush.bf16.xpose.msra.mxu0 0
        %622 = vmatpush.bf16.xpose.msra.mxu0 0
        %623 = vmatpush.bf16.xpose.msra.mxu0 0
        %624 = vmatpush.bf16.xpose.msra.mxu0 0
        %625 = vmatpush.bf16.xpose.msra.mxu0 0
        %626 = vmatpush.bf16.xpose.msra.mxu0 0
        %627 = vmatpush.bf16.xpose.msra.mxu0 %v618
        %628 = vmatmul.bf16.gmra.mxu0 %v615
        %v629 = vpop.f32.mrf.mxu0
        %v630 = vadd.f32 0.0, %v629
        %v631 = vpop.f32.mrf.mxu0
        %632 = vdwg.mxu0
        %vm633 = vcmask 64512
        %v634 = vsel %vm633, %v630, -inf
        %635 = vmax.xlane.f32.xlu0 %v634
        %v636 = vpop.xlane.xlu0 %635
        %v637 = vsub.f32 %v630, %v636
        %v638 = vmul.f32 %v637, 1.442695
        %v639 = vpow.pop %v638
        %v640 = vsel %vm633, %v639, 0.0
        %641 = vadd.xlane.f32.xlu0 %v640
        %v642 = vpop.xlane.xlu0 %641
        %v643 = vrcp.pop %v642
        %v644 = vmul.f32 %v639, %v643
        %v645 = vpack.c.bf16 %v644, %v644
        %v646 = vpack.c.bf16 %v608, %v608
        %v648 = vsel %vm633, %v645, 0
        %vm650 = vcmask 1043456
        %v652 = vsel %vm650, %v646, 0
        %654 = vmatpush.bf16.msra.mxu0 0
        %655 = vmatpush.bf16.msra.mxu0 0
        %656 = vmatpush.bf16.msra.mxu0 0
        %657 = vmatpush.bf16.msra.mxu0 0
        %658 = vmatpush.bf16.msra.mxu0 0
        %659 = vmatpush.bf16.msra.mxu0 0
        %660 = vmatpush.bf16.msra.mxu0 0
        %661 = vmatpush.bf16.msra.mxu0 %v652
        %662 = vmatmul.bf16.gmra.mxu0 %v648
        %v663 = vpop.f32.mrf.mxu0
        %v664 = vadd.f32 0.0, %v663
        %v665 = vpop.f32.mrf.mxu0
        %666 = vdwg.mxu0
        %v668 = vunpack.c.l.b16 %v611
        %v669 = vpack.c.b16 %v668, %v668
        %670 = vrot.lane.b32.xlu0 %v669, 96
        %v671 = vpop.permute.xlu0 %670
        %v673 = vunpack.c.l.b16 %v612
        %v674 = vpack.c.b16 %v673, %v673
        %675 = vrot.lane.b32.xlu0 %v674, 96
        %v676 = vpop.permute.xlu0 %675
        %v678 = vsel %vm613, %v671, 0
        %v681 = vsel %vm613, %v676, 0
        %683 = vmatpush.bf16.xpose.msra.mxu0 0
        %684 = vmatpush.bf16.xpose.msra.mxu0 0
        %685 = vmatpush.bf16.xpose.msra.mxu0 0
        %686 = vmatpush.bf16.xpose.msra.mxu0 0
        %687 = vmatpush.bf16.xpose.msra.mxu0 0
        %688 = vmatpush.bf16.xpose.msra.mxu0 0
        %689 = vmatpush.bf16.xpose.msra.mxu0 0
        %690 = vmatpush.bf16.xpose.msra.mxu0 %v681
        %691 = vmatmul.bf16.gmra.mxu0 %v678
        %v692 = vpop.f32.mrf.mxu0
        %v693 = vadd.f32 0.0, %v692
        %v694 = vpop.f32.mrf.mxu0
        %695 = vdwg.mxu0
        %v696 = vsel %vm633, %v693, -inf
        %697 = vmax.xlane.f32.xlu0 %v696
        %v698 = vpop.xlane.xlu0 %697
        %v699 = vsub.f32 %v693, %v698
        %v700 = vmul.f32 %v699, 1.442695
        %v701 = vpow.pop %v700
        %v702 = vsel %vm633, %v701, 0.0
        %703 = vadd.xlane.f32.xlu0 %v702
        %v704 = vpop.xlane.xlu0 %703
        %v705 = vrcp.pop %v704
        %v706 = vmul.f32 %v701, %v705
        %v707 = vpack.c.bf16 %v706, %v706
        %v709 = vunpack.c.l.b16 %v646
        %v710 = vpack.c.b16 %v709, %v709
        %711 = vrot.lane.b32.xlu0 %v710, 96
        %v712 = vpop.permute.xlu0 %711
        %v714 = vsel %vm633, %v707, 0
        %v717 = vsel %vm650, %v712, 0
        %719 = vmatpush.bf16.msra.mxu0 0
        %720 = vmatpush.bf16.msra.mxu0 0
        %721 = vmatpush.bf16.msra.mxu0 0
        %722 = vmatpush.bf16.msra.mxu0 0
        %723 = vmatpush.bf16.msra.mxu0 0
        %724 = vmatpush.bf16.msra.mxu0 0
        %725 = vmatpush.bf16.msra.mxu0 0
        %726 = vmatpush.bf16.msra.mxu0 %v717
        %727 = vmatmul.bf16.gmra.mxu0 %v714
        %v728 = vpop.f32.mrf.mxu0
        %v729 = vadd.f32 0.0, %v728
        %v730 = vpop.f32.mrf.mxu0
        %731 = vdwg.mxu0
        %732 = vrot.lane.b32.xlu0 %v669, 64
        %v733 = vpop.permute.xlu0 %732
        %734 = vrot.lane.b32.xlu0 %v674, 64
        %v735 = vpop.permute.xlu0 %734
        %v737 = vsel %vm613, %v733, 0
        %v740 = vsel %vm613, %v735, 0
        %742 = vmatpush.bf16.xpose.msra.mxu0 0
        %743 = vmatpush.bf16.xpose.msra.mxu0 0
        %744 = vmatpush.bf16.xpose.msra.mxu0 0
        %745 = vmatpush.bf16.xpose.msra.mxu0 0
        %746 = vmatpush.bf16.xpose.msra.mxu0 0
        %747 = vmatpush.bf16.xpose.msra.mxu0 0
        %748 = vmatpush.bf16.xpose.msra.mxu0 0
        %749 = vmatpush.bf16.xpose.msra.mxu0 %v740
        %750 = vmatmul.bf16.gmra.mxu0 %v737
        %v751 = vpop.f32.mrf.mxu0
        %v752 = vadd.f32 0.0, %v751
        %v753 = vpop.f32.mrf.mxu0
        %754 = vdwg.mxu0
        %v755 = vsel %vm633, %v752, -inf
        %756 = vmax.xlane.f32.xlu0 %v755
        %v757 = vpop.xlane.xlu0 %756
        %v758 = vsub.f32 %v752, %v757
        %v759 = vmul.f32 %v758, 1.442695
        %v760 = vpow.pop %v759
        %v761 = vsel %vm633, %v760, 0.0
        %762 = vadd.xlane.f32.xlu0 %v761
        %v763 = vpop.xlane.xlu0 %762
        %v764 = vrcp.pop %v763
        %v765 = vmul.f32 %v760, %v764
        %v766 = vpack.c.bf16 %v765, %v765
        %767 = vrot.lane.b32.xlu0 %v710, 64
        %v768 = vpop.permute.xlu0 %767
        %v770 = vsel %vm633, %v766, 0
        %v773 = vsel %vm650, %v768, 0
        %775 = vmatpush.bf16.msra.mxu0 0
        %776 = vmatpush.bf16.msra.mxu0 0
        %777 = vmatpush.bf16.msra.mxu0 0
        %778 = vmatpush.bf16.msra.mxu0 0
        %779 = vmatpush.bf16.msra.mxu0 0
        %780 = vmatpush.bf16.msra.mxu0 0
        %781 = vmatpush.bf16.msra.mxu0 0
        %782 = vmatpush.bf16.msra.mxu0 %v773
        %783 = vmatmul.bf16.gmra.mxu0 %v770
        %v784 = vpop.f32.mrf.mxu0
        %v785 = vadd.f32 0.0, %v784
        %v786 = vpop.f32.mrf.mxu0
        %787 = vdwg.mxu0
        %788 = vrot.lane.b32.xlu0 %v669, 32
        %v789 = vpop.permute.xlu0 %788
        %790 = vrot.lane.b32.xlu0 %v674, 32
        %v791 = vpop.permute.xlu0 %790
        %v793 = vsel %vm613, %v789, 0
        %v796 = vsel %vm613, %v791, 0
        %798 = vmatpush.bf16.xpose.msra.mxu0 0
        %799 = vmatpush.bf16.xpose.msra.mxu0 0
        %800 = vmatpush.bf16.xpose.msra.mxu0 0
        %801 = vmatpush.bf16.xpose.msra.mxu0 0
        %802 = vmatpush.bf16.xpose.msra.mxu0 0
        %803 = vmatpush.bf16.xpose.msra.mxu0 0
        %804 = vmatpush.bf16.xpose.msra.mxu0 0
        %805 = vmatpush.bf16.xpose.msra.mxu0 %v796
        %806 = vmatmul.bf16.gmra.mxu0 %v793
        %v807 = vpop.f32.mrf.mxu0
        %v808 = vadd.f32 0.0, %v807
        %v809 = vpop.f32.mrf.mxu0
        %810 = vdwg.mxu0
        %v811 = vsel %vm633, %v808, -inf
        %812 = vmax.xlane.f32.xlu0 %v811
        %v813 = vpop.xlane.xlu0 %812
        %v814 = vsub.f32 %v808, %v813
        %v815 = vmul.f32 %v814, 1.442695
        %v816 = vpow.pop %v815
        %v817 = vsel %vm633, %v816, 0.0
        %818 = vadd.xlane.f32.xlu0 %v817
        %v819 = vpop.xlane.xlu0 %818
        %v820 = vrcp.pop %v819
        %v821 = vmul.f32 %v816, %v820
        %v822 = vpack.c.bf16 %v821, %v821
        %823 = vrot.lane.b32.xlu0 %v710, 32
        %v824 = vpop.permute.xlu0 %823
        %v826 = vsel %vm633, %v822, 0
        %v829 = vsel %vm650, %v824, 0
        %831 = vmatpush.bf16.msra.mxu0 0
        %832 = vmatpush.bf16.msra.mxu0 0
        %833 = vmatpush.bf16.msra.mxu0 0
        %834 = vmatpush.bf16.msra.mxu0 0
        %835 = vmatpush.bf16.msra.mxu0 0
        %836 = vmatpush.bf16.msra.mxu0 0
        %837 = vmatpush.bf16.msra.mxu0 0
        %838 = vmatpush.bf16.msra.mxu0 %v829
        %839 = vmatmul.bf16.gmra.mxu0 %v826
        %v840 = vpop.f32.mrf.mxu0
        %v841 = vadd.f32 0.0, %v840
        %v842 = vpop.f32.mrf.mxu0
        %843 = vdwg.mxu0
        %845 = vrot.lane.b32.xlu0 %v729, 32
        %v846 = vpop.permute.xlu0 %845
        %849 = vrot.lane.b32.xlu0 %v785, 64
        %v850 = vpop.permute.xlu0 %849
        %853 = vrot.lane.b32.xlu0 %v841, 96
        %v854 = vpop.permute.xlu0 %853
        %v856 = vsel %vm613, %v664, %v846
        %vm857 = vcmask 523264
        %v858 = vsel %vm857, %v856, %v850
        %vm859 = vcmask 785408
        %v860 = vsel %vm859, %v858, %v854
        %v861 = vpack.c.bf16 %v860, %v860
        %v862 = vperm.slane %v352, 0
        %v879 = vunpack.c.l.b16 %v403
        %v880 = vunpack.c.l.b16 %v404
        %v881 = vunpack.c.l.b16 %v405
        %v882 = vunpack.c.l.b16 %v406
        %v883 = vunpack.c.l.b16 %v407
        %v884 = vunpack.c.l.b16 %v408
        %v885 = vunpack.c.l.b16 %v409
        %v886 = vunpack.c.l.b16 %v410
        %v887 = vunpack.c.l.b16 %v411
        %v888 = vunpack.c.l.b16 %v412
        %v889 = vunpack.c.l.b16 %v413
        %v890 = vunpack.c.l.b16 %v414
        %v891 = vunpack.c.l.b16 %v415
        %v892 = vunpack.c.l.b16 %v416
        %v893 = vunpack.c.l.b16 %v417
        %v894 = vunpack.c.l.b16 %v418
        %v895 = vpack.c.b16 %v880, %v879
        %v896 = vpack.c.b16 %v882, %v881
        %v897 = vpack.c.b16 %v884, %v883
        %v898 = vpack.c.b16 %v886, %v885
        %v899 = vpack.c.b16 %v888, %v887
        %v900 = vpack.c.b16 %v890, %v889
        %v901 = vpack.c.b16 %v892, %v891
        %v902 = vpack.c.b16 %v894, %v893
        %911 = vmatpush.bf16.msra.mxu0 %v902
        %912 = vmatpush.bf16.msra.mxu0 %v901
        %913 = vmatpush.bf16.msra.mxu0 %v900
        %914 = vmatpush.bf16.msra.mxu0 %v899
        %915 = vmatpush.bf16.msra.mxu0 %v898
        %916 = vmatpush.bf16.msra.mxu0 %v897
        %917 = vmatpush.bf16.msra.mxu0 %v896
        %918 = vmatpush.bf16.msra.mxu0 %v895
        %919 = vmatmul.bf16.gmra.mxu0 %v861
        %v920 = vpop.f32.mrf.mxu0
        %v921 = vadd.f32 %v862, %v920
        %v922 = vpop.f32.mrf.mxu0
        %923 = vdwg.mxu0
        %v924 = vadd.f32 %v419, %v921
        %925 = vadd.xlane.f32.xlu0 %v924
        %v926 = vpop.xlane.xlu0 %925
        %v927 = vrcp.pop 128.0
        %v928 = vmul.f32 128.0, %v927
        %v929 = vsub.f32 1.0, %v928
        %v930 = vmul.f32 %v927, %v929
        %v931 = vadd.f32 %v927, %v930
        %vm932 = vweird.f32 %v927
        %v933 = vsel %vm932, %v927, %v931
        %v934 = vmul.f32 %v926, %v933
        %v935 = vmul.f32 %v924, %v924
        %936 = vadd.xlane.f32.xlu0 %v935
        %v937 = vpop.xlane.xlu0 %936
        %v938 = vmul.f32 %v937, %v933
        %v939 = vmul.f32 %v934, %v934
        %v940 = vsub.f32 %v938, %v939
        %v941 = vsub.f32 %v924, %v934
        %v942 = vadd.f32 %v940, 1e-05
        %v943 = vrsqrt.pop %v942
        %v944 = vmul.f32 %v943, %v942
        %v945 = vmul.f32 %v944, %v943
        %v946 = vmul.f32 0.5, %v945
        %v947 = vsub.f32 1.5, %v946
        %v948 = vmul.f32 %v943, %v947
        %vm949 = vweird.f32 %v942
        %vm950 = vweird.f32 %v943
        %vm951 = vmor %vm949, %vm950
        %v952 = vsel %vm951, %v943, %v948
        %v953 = vmul.f32 %v941, %v952
        %v954 = vperm.slane %v353, 0
        %v955 = vmul.f32 %v953, %v954
        %v956 = vperm.slane %v354, 0
        %v957 = vadd.f32 %v955, %v956
        %958 = vst [vmem:[%s347] sm:$0xff] %v957
        %s959 = sand.u32 %s154, 1
        %s960 = scalar_lea.sflag [#allocation4], %s959
        %s961 = sand.u32 %s154, 1
        %s962 = smul.addr %s961, 8
        %s963 = scalar_lea.vmem [#allocation11], %s962
        // Predicated region
        $region61: #{tpu_custom_call.1} parent=39 // pred_check
          %p964 = pneg %p164
        $region62: #{tpu_custom_call.1} parent=39 // pred_check_branch
          %966 = sbr.rel (%p964) target = $region64
        $region63: #{tpu_custom_call.1} parent=39 // pred_region
          %968 = vsyncadd %s960, 0
          %s969 = smul.addr %s26, 8
          %s970 = scalar_lea.hbm %s5, %s969
          %s972 = sshll.u32 %s963, 4
          %s973 = int_to_ptr.vmem [resolvable:$true] %s972
          %s974 = sshll.u32 %s970, 4
          %s975 = int_to_ptr.hbm [resolvable:$true] %s974
          %977 = dma.vmem_to_hbm [thread:$0]  %s973, 128, %s975, %s960
        $region64: #{tpu_custom_call.1} parent=39 // pred_fallthru
          _
      $region40: #{tpu_custom_call.1} parent=5 // pred_fallthru
        _
      %p978 = scmp.le.s32.totalorder 2, %s21
      // Predicated region
      $region65: #{tpu_custom_call.1} parent=5 // pred_check
        %p979 = pneg %p978
      $region66: #{tpu_custom_call.1} parent=5 // pred_check_branch
        %981 = sbr.rel (%p979) target = $region68
      $region67: #{tpu_custom_call.1} parent=5 // pred_region
        %s982 = ssub.s32 %s21, 2
        // Predicated region
        $region69: #{tpu_custom_call.1} parent=67 // pred_check
          %p983 = pneg %p170
        $region70: #{tpu_custom_call.1} parent=67 // pred_check_branch
          %985 = sbr.rel (%p983) target = $region72
        $region71: #{tpu_custom_call.1} parent=67 // pred_region
          %s986 = sand.u32 %s155, 1
          %s987 = scalar_lea.sflag [#allocation4], %s986
          %s988 = sand.u32 %s155, 1
          %s989 = smul.addr %s988, 8
          %s990 = scalar_lea.vmem [#allocation11], %s989
          %992 = dma.done %s987, 128
        $region72: #{tpu_custom_call.1} parent=67 // pred_fallthru
          _
      $region68: #{tpu_custom_call.1} parent=5 // pred_fallthru
        _
    $region6: #{tpu_custom_call.1} parent=1 // loop_footer
      %s25 = sadd.s32 1, %s21
    $region7: #{tpu_custom_call.1} parent=1 // loop_footer_branch
      %20 = sbr.rel target = $region3
    $region8: #{tpu_custom_call.1} parent=1 // loop_exit
      _
    %993 = vsyncpa [#allocation3], 1
    %s994 = scalar_lea.sflag [#allocation3], 1
    %995 = vsyncpa %s994, 1
    %996 = vsyncpa [#allocation6], 1
    %s997 = scalar_lea.sflag [#allocation6], 1
    %998 = vsyncpa %s997, 1
    %999 = vsyncpa [#allocation9], 1
    %1000 = vsyncpa [#allocation4], 1
    %s1001 = scalar_lea.sflag [#allocation4], 1
    %1002 = vsyncpa %s1001, 1

// kernel: tpu_custom_call.1
$region0: #{tpu_custom_call.1}
  #allocation0 [shape = 'u32[]', space=smem, size = 0x4, offset = 0x4, fixed_abs, tag = 'smem constant byte address 0x4 - core index']
  #allocation1 [shape = 'u32[72,128]{1,0:T(1,128)}', space=vmem, size = 0x9000, scoped, tag = 'internal scratch']
  %s0 = inlined_call_operand.hbm [shape: f32[2,8,128], index: 0, kind: input, shape index: {}]
  %s1 = inlined_call_operand.hbm [shape: f32[2,8,128], index: 1, kind: input, shape index: {}]
  %s2 = inlined_call_operand.hbm [shape: f32[2,8,128], index: 2, kind: input, shape index: {}]
  %s3 = inlined_call_operand.hbm [shape: bf16[4,128,128], index: 3, kind: input, shape index: {}]
  %s4 = inlined_call_operand.hbm [shape: f32[8,128], index: 4, kind: input, shape index: {}]
  %s5 = inlined_call_operand.hbm [shape: f32[2,8,128], index: 5, kind: output, shape index: {}]
  %s6 = sld [smem:[#allocation0]]
  $region73: #{tpu_custom_call.1} parent=0
    _
  %s8 = ssub.s32 1, %s6
  %s9 = scalar_select 0, %s8, %s6
  $region1: #{tpu_custom_call.1} parent=0
    #allocation2 [shape = 'u8[8192]{0}', space=vmem, size = 0x2000, scoped, tag = 'input window, operand 0']
    #allocation3 [shape = 's32[2]{0}', space=sflag, size = 0x8, scoped, tag = 'scoped memory for tpu_custom_call.1']
    #allocation4 [shape = 's32[2]{0}', space=sflag, size = 0x8, scoped, tag = 'scoped memory for tpu_custom_call.1']
    #allocation5 [shape = 'u8[8192]{0}', space=vmem, size = 0x2000, scoped, tag = 'input window, operand 1']
    #allocation6 [shape = 's32[2]{0}', space=sflag, size = 0x8, scoped, tag = 'scoped memory for tpu_custom_call.1']
    #allocation7 [shape = 'u8[8192]{0}', space=vmem, size = 0x2000, scoped, tag = 'input window, operand 2']
    #allocation8 [shape = 'u8[131072]{0}', space=vmem, size = 0x20000, scoped, tag = 'input window, operand 3, single buffered']
    #allocation9 [shape = 's32[1]{0}', space=sflag, size = 0x4, scoped, tag = 'scoped memory for tpu_custom_call.1']
    #allocation10 [shape = 'u8[4096]{0}', space=vmem, size = 0x1000, scoped, tag = 'input window, operand 4, single buffered']
    #allocation11 [shape = 'u8[8192]{0}', space=vmem, size = 0x2000, scoped, tag = 'output window, operand 0']
    %10 = vsyncpa [#allocation3], 0
    %s11 = scalar_lea.sflag [#allocation3], 1
    %12 = vsyncpa %s11, 0
    %13 = vsyncpa [#allocation6], 0
    %s14 = scalar_lea.sflag [#allocation6], 1
    %15 = vsyncpa %s14, 0
    %16 = vsyncpa [#allocation9], 0
    %17 = vsyncpa [#allocation4], 0
    %s18 = scalar_lea.sflag [#allocation4], 1
    %19 = vsyncpa %s18, 0
    loop: start=0, step=1, limit=4
    $region2: #{tpu_custom_call.1} parent=1 // loop_pre_header
      _
    $region3: #{tpu_custom_call.1} parent=1 // loop_header
      %s21 = sphi 0, %s25
      %p22 = scmp.ge.s32.totalorder %s21, 4
      %s31 = sphi 0, %s33
      %s34 = sphi 0, %s31
      %s35 = sphi 0, %s34
      %s51 = sphi 0, %s35
      %s57 = sphi 0, %s59
      %s60 = sphi 0, %s57
      %s61 = sphi 0, %s60
      %s77 = sphi 0, %s61
      %s83 = sphi 0, %s85
      %s86 = sphi 0, %s83
      %s87 = sphi 0, %s86
      %s103 = sphi 0, %s87
      %s107 = sphi 0, %s107
      %s109 = sphi 0, %s107
      %s110 = sphi 0, %s109
      %s124 = sphi 0, %s110
      %s128 = sphi 0, %s128
      %s130 = sphi 0, %s128
      %s131 = sphi 0, %s130
      %s145 = sphi 0, %s131
      %s151 = sphi 0, %s153
      %s154 = sphi 0, %s151
      %s155 = sphi 0, %s154
      %s171 = sphi 0, %s155
    $region4: #{tpu_custom_call.1} parent=1 // loop_header_branch
      %24 = sbr.rel (%p22) target = $region8
    $region5: #{tpu_custom_call.1} parent=1 // loop_body
      %s26 = ssub.s32 %s21, 1
      %s27 = ssub.s32 %s21, 2
      %s28 = sadd.s32 %s21, 1
      %s29 = ssub.s32 %s21, %s28
      %p30 = scmp.eq.s32.totalorder %s29, 0
      %s32 = sadd.s32 %s31, 1
      %s33 = scalar_select %p30, %s31, %s32
      %p36 = pneg %p30
      %p37 = scmp.eq.s32.totalorder %s21, 1
      %p38 = por %p36, %p37
      %p39 = scmp.ne.s32.totalorder %s31, %s34
      %p40 = scmp.eq.s32.totalorder %s21, 0
      %p41 = por %p39, %p40
      %p42 = scmp.ne.s32.totalorder %s31, %s34
      %p43 = scmp.eq.s32.totalorder %s26, 1
      %p44 = por %p42, %p43
      %p45 = scmp.ne.s32.totalorder %s34, %s35
      %p46 = scmp.eq.s32.totalorder %s26, 0
      %p47 = por %p45, %p46
      %p48 = scmp.ne.s32.totalorder %s34, %s35
      %p49 = scmp.eq.s32.totalorder %s27, 1
      %p50 = por %p48, %p49
      %p52 = scmp.ne.s32.totalorder %s35, %s51
      %p53 = scmp.eq.s32.totalorder %s27, 0
      %p54 = por %p52, %p53
      %s55 = ssub.s32 %s21, %s28
      %p56 = scmp.eq.s32.totalorder %s55, 0
      %s58 = sadd.s32 %s57, 1
      %s59 = scalar_select %p56, %s57, %s58
      %p62 = pneg %p56
      %p63 = scmp.eq.s32.totalorder %s21, 1
      %p64 = por %p62, %p63
      %p65 = scmp.ne.s32.totalorder %s57, %s60
      %p66 = scmp.eq.s32.totalorder %s21, 0
      %p67 = por %p65, %p66
      %p68 = scmp.ne.s32.totalorder %s57, %s60
      %p69 = scmp.eq.s32.totalorder %s26, 1
      %p70 = por %p68, %p69
      %p71 = scmp.ne.s32.totalorder %s60, %s61
      %p72 = scmp.eq.s32.totalorder %s26, 0
      %p73 = por %p71, %p72
      %p74 = scmp.ne.s32.totalorder %s60, %s61
      %p75 = scmp.eq.s32.totalorder %s27, 1
      %p76 = por %p74, %p75
      %p78 = scmp.ne.s32.totalorder %s61, %s77
      %p79 = scmp.eq.s32.totalorder %s27, 0
      %p80 = por %p78, %p79
      %s81 = ssub.s32 %s21, %s28
      %p82 = scmp.eq.s32.totalorder %s81, 0
      %s84 = sadd.s32 %s83, 1
      %s85 = scalar_select %p82, %s83, %s84
      %p88 = pneg %p82
      %p89 = scmp.eq.s32.totalorder %s21, 1
      %p90 = por %p88, %p89
      %p91 = scmp.ne.s32.totalorder %s83, %s86
      %p92 = scmp.eq.s32.totalorder %s21, 0
      %p93 = por %p91, %p92
      %p94 = scmp.ne.s32.totalorder %s83, %s86
      %p95 = scmp.eq.s32.totalorder %s26, 1
      %p96 = por %p94, %p95
      %p97 = scmp.ne.s32.totalorder %s86, %s87
      %p98 = scmp.eq.s32.totalorder %s26, 0
      %p99 = por %p97, %p98
      %p100 = scmp.ne.s32.totalorder %s86, %s87
      %p101 = scmp.eq.s32.totalorder %s27, 1
      %p102 = por %p100, %p101
      %p104 = scmp.ne.s32.totalorder %s87, %s103
      %p105 = scmp.eq.s32.totalorder %s27, 0
      %p106 = por %p104, %p105
      %s108 = sadd.s32 %s107, 1
      %p111 = scmp.eq.s32.totalorder %s21, 1
      %p112 = scmp.ne.s32.totalorder %s107, %s109
      %p113 = scmp.eq.s32.totalorder %s21, 0
      %p114 = por %p112, %p113
      %p115 = scmp.ne.s32.totalorder %s107, %s109
      %p116 = scmp.eq.s32.totalorder %s26, 1
      %p117 = por %p115, %p116
      %p118 = scmp.ne.s32.totalorder %s109, %s110
      %p119 = scmp.eq.s32.totalorder %s26, 0
      %p120 = por %p118, %p119
      %p121 = scmp.ne.s32.totalorder %s109, %s110
      %p122 = scmp.eq.s32.totalorder %s27, 1
      %p123 = por %p121, %p122
      %p125 = scmp.ne.s32.totalorder %s110, %s124
      %p126 = scmp.eq.s32.totalorder %s27, 0
      %p127 = por %p125, %p126
      %s129 = sadd.s32 %s128, 1
      %p132 = scmp.eq.s32.totalorder %s21, 1
      %p133 = scmp.ne.s32.totalorder %s128, %s130
      %p134 = scmp.eq.s32.totalorder %s21, 0
      %p135 = por %p133, %p134
      %p136 = scmp.ne.s32.totalorder %s128, %s130
      %p137 = scmp.eq.s32.totalorder %s26, 1
      %p138 = por %p136, %p137
      %p139 = scmp.ne.s32.totalorder %s130, %s131
      %p140 = scmp.eq.s32.totalorder %s26, 0
      %p141 = por %p139, %p140
      %p142 = scmp.ne.s32.totalorder %s130, %s131
      %p143 = scmp.eq.s32.totalorder %s27, 1
      %p144 = por %p142, %p143
      %p146 = scmp.ne.s32.totalorder %s131, %s145
      %p147 = scmp.eq.s32.totalorder %s27, 0
      %p148 = por %p146, %p147
      %s149 = ssub.s32 %s21, %s28
      %p150 = scmp.eq.s32.totalorder %s149, 0
      %s152 = sadd.s32 %s151, 1
      %s153 = scalar_select %p150, %s151, %s152
      %p156 = pneg %p150
      %p157 = scmp.eq.s32.totalorder %s21, 1
      %p158 = por %p156, %p157
      %p159 = scmp.ne.s32.totalorder %s151, %s154
      %p160 = scmp.eq.s32.totalorder %s21, 0
      %p161 = por %p159, %p160
      %p162 = scmp.ne.s32.totalorder %s151, %s154
      %p163 = scmp.eq.s32.totalorder %s26, 1
      %p164 = por %p162, %p163
      %p165 = scmp.ne.s32.totalorder %s154, %s155
      %p166 = scmp.eq.s32.totalorder %s26, 0
      %p167 = por %p165, %p166
      %p168 = scmp.ne.s32.totalorder %s154, %s155
      %p169 = scmp.eq.s32.totalorder %s27, 1
      %p170 = por %p168, %p169
      %p172 = scmp.ne.s32.totalorder %s155, %s171
      %p173 = scmp.eq.s32.totalorder %s27, 0
      %p174 = por %p172, %p173
      %p175 = scmp.le.s32.totalorder 1, %s21
      %p176 = scmp.lt.s32.totalorder %s21, 3
      %p177 = pnand %p175, %p176
      %p178 = pneg %p177
      // Predicated region
      $region9: #{tpu_custom_call.1} parent=5 // pred_check
        _
      $region10: #{tpu_custom_call.1} parent=5 // pred_check_branch
        %180 = sbr.rel (%p177) target = $region12
      $region11: #{tpu_custom_call.1} parent=5 // pred_region
        %s181 = ssub.s32 %s21, 1
        // Predicated region
        $region13: #{tpu_custom_call.1} parent=11 // pred_check
          %p182 = pneg %p120
        $region14: #{tpu_custom_call.1} parent=11 // pred_check_branch
          %184 = sbr.rel (%p182) target = $region16
        $region15: #{tpu_custom_call.1} parent=11 // pred_region
          %186 = vsyncadd [#allocation9], 0
          %s187 = sshll.u32 %s3, 4
          %s188 = int_to_ptr.hbm [resolvable:$true] %s187
          %s189 = sshll.u32 [#allocation8], 4
          %s190 = int_to_ptr.vmem [resolvable:$true] %s189
          %195 = dma.hbm_to_vmem [thread:$0]  %s188, 4096, %s190, [#allocation9], 64, 64, 4
        $region16: #{tpu_custom_call.1} parent=11 // pred_fallthru
          _
        // Predicated region
        $region17: #{tpu_custom_call.1} parent=11 // pred_check
          %p196 = pneg %p141
        $region18: #{tpu_custom_call.1} parent=11 // pred_check_branch
          %198 = sbr.rel (%p196) target = $region20
        $region19: #{tpu_custom_call.1} parent=11 // pred_region
          %200 = vsyncadd [#allocation9], 0
          %s202 = sshll.u32 %s4, 4
          %s203 = int_to_ptr.hbm [resolvable:$true] %s202
          %s204 = sshll.u32 [#allocation10], 4
          %s205 = int_to_ptr.vmem [resolvable:$true] %s204
          %207 = dma.hbm_to_vmem [thread:$0]  %s203, 128, %s205, [#allocation9]
        $region20: #{tpu_custom_call.1} parent=11 // pred_fallthru
          _
      $region12: #{tpu_custom_call.1} parent=5 // pred_fallthru
        _
      %p208 = scmp.lt.s32.totalorder %s21, 2
      // Predicated region
      $region21: #{tpu_custom_call.1} parent=5 // pred_check
        %p209 = pneg %p208
      $region22: #{tpu_custom_call.1} parent=5 // pred_check_branch
        %211 = sbr.rel (%p209) target = $region24
      $region23: #{tpu_custom_call.1} parent=5 // pred_region
        // Predicated region
        $region25: #{tpu_custom_call.1} parent=23 // pred_check
          %p212 = pneg %p41
        $region26: #{tpu_custom_call.1} parent=23 // pred_check_branch
          %214 = sbr.rel (%p212) target = $region28
        $region27: #{tpu_custom_call.1} parent=23 // pred_region
          %s215 = sand.u32 %s31, 1
          %s216 = scalar_lea.sflag [#allocation3], %s215
          %s217 = sand.u32 %s31, 1
          %s218 = smul.addr %s217, 8
          %s219 = scalar_lea.vmem [#allocation2], %s218
          %221 = vsyncadd %s216, 0
          %s222 = smul.addr %s21, 8
          %s223 = scalar_lea.hbm %s0, %s222
          %s225 = sshll.u32 %s223, 4
          %s226 = int_to_ptr.hbm [resolvable:$true] %s225
          %s227 = sshll.u32 %s219, 4
          %s228 = int_to_ptr.vmem [resolvable:$true] %s227
          %230 = dma.hbm_to_vmem [thread:$0]  %s226, 128, %s228, %s216
        $region28: #{tpu_custom_call.1} parent=23 // pred_fallthru
          _
        // Predicated region
        $region29: #{tpu_custom_call.1} parent=23 // pred_check
          %p231 = pneg %p67
        $region30: #{tpu_custom_call.1} parent=23 // pred_check_branch
          %233 = sbr.rel (%p231) target = $region32
        $region31: #{tpu_custom_call.1} parent=23 // pred_region
          %s234 = sand.u32 %s21, 1
          %s235 = scalar_lea.sflag [#allocation6], %s234
          %s236 = sand.u32 %s57, 1
          %s237 = smul.addr %s236, 8
          %s238 = scalar_lea.vmem [#allocation5], %s237
          %240 = vsyncadd %s235, 0
          %s241 = smul.addr %s21, 8
          %s242 = scalar_lea.hbm %s1, %s241
          %s244 = sshll.u32 %s242, 4
          %s245 = int_to_ptr.hbm [resolvable:$true] %s244
          %s246 = sshll.u32 %s238, 4
          %s247 = int_to_ptr.vmem [resolvable:$true] %s246
          %249 = dma.hbm_to_vmem [thread:$0]  %s245, 128, %s247, %s235
        $region32: #{tpu_custom_call.1} parent=23 // pred_fallthru
          _
        // Predicated region
        $region33: #{tpu_custom_call.1} parent=23 // pred_check
          %p250 = pneg %p93
        $region34: #{tpu_custom_call.1} parent=23 // pred_check_branch
          %252 = sbr.rel (%p250) target = $region36
        $region35: #{tpu_custom_call.1} parent=23 // pred_region
          %s253 = sand.u32 %s21, 1
          %s254 = scalar_lea.sflag [#allocation6], %s253
          %s255 = sand.u32 %s83, 1
          %s256 = smul.addr %s255, 8
          %s257 = scalar_lea.vmem [#allocation7], %s256
          %259 = vsyncadd %s254, 0
          %s260 = smul.addr %s21, 8
          %s261 = scalar_lea.hbm %s2, %s260
          %s263 = sshll.u32 %s261, 4
          %s264 = int_to_ptr.hbm [resolvable:$true] %s263
          %s265 = sshll.u32 %s257, 4
          %s266 = int_to_ptr.vmem [resolvable:$true] %s265
          %268 = dma.hbm_to_vmem [thread:$0]  %s264, 128, %s266, %s254
        $region36: #{tpu_custom_call.1} parent=23 // pred_fallthru
          _
      $region24: #{tpu_custom_call.1} parent=5 // pred_fallthru
        _
      %p269 = scmp.le.s32.totalorder 1, %s21
      %p270 = scmp.lt.s32.totalorder %s21, 3
      %p271 = pnand %p269, %p270
      %p272 = pneg %p271
      // Predicated region
      $region37: #{tpu_custom_call.1} parent=5 // pred_check
        _
      $region38: #{tpu_custom_call.1} parent=5 // pred_check_branch
        %274 = sbr.rel (%p271) target = $region40
      $region39: #{tpu_custom_call.1} parent=5 // pred_region
        %s275 = ssub.s32 %s21, 1
        %s276 = sand.u32 %s34, 1
        %s277 = scalar_lea.sflag [#allocation3], %s276
        %s278 = sand.u32 %s34, 1
        %s279 = smul.addr %s278, 8
        %s280 = scalar_lea.vmem [#allocation2], %s279
        // Predicated region
        $region41: #{tpu_custom_call.1} parent=39 // pred_check
          %p281 = pneg %p47
        $region42: #{tpu_custom_call.1} parent=39 // pred_check_branch
          %283 = sbr.rel (%p281) target = $region44
        $region43: #{tpu_custom_call.1} parent=39 // pred_region
          %285 = dma.done %s277, 128
        $region44: #{tpu_custom_call.1} parent=39 // pred_fallthru
          _
        %s286 = sand.u32 %s26, 1
        %s287 = scalar_lea.sflag [#allocation6], %s286
        %s288 = sand.u32 %s60, 1
        %s289 = smul.addr %s288, 8
        %s290 = scalar_lea.vmem [#allocation5], %s289
        // Predicated region
        $region45: #{tpu_custom_call.1} parent=39 // pred_check
          %p291 = pneg %p73
        $region46: #{tpu_custom_call.1} parent=39 // pred_check_branch
          %293 = sbr.rel (%p291) target = $region48
        $region47: #{tpu_custom_call.1} parent=39 // pred_region
          %295 = dma.done %s287, 128
        $region48: #{tpu_custom_call.1} parent=39 // pred_fallthru
          _
        %s296 = sand.u32 %s26, 1
        %s297 = scalar_lea.sflag [#allocation6], %s296
        %s298 = sand.u32 %s86, 1
        %s299 = smul.addr %s298, 8
        %s300 = scalar_lea.vmem [#allocation7], %s299
        // Predicated region
        $region49: #{tpu_custom_call.1} parent=39 // pred_check
          %p301 = pneg %p99
        $region50: #{tpu_custom_call.1} parent=39 // pred_check_branch
          %303 = sbr.rel (%p301) target = $region52
        $region51: #{tpu_custom_call.1} parent=39 // pred_region
          %305 = dma.done %s297, 128
        $region52: #{tpu_custom_call.1} parent=39 // pred_fallthru
          _
        // Predicated region
        $region53: #{tpu_custom_call.1} parent=39 // pred_check
          %p306 = pneg %p120
        $region54: #{tpu_custom_call.1} parent=39 // pred_check_branch
          %308 = sbr.rel (%p306) target = $region56
        $region55: #{tpu_custom_call.1} parent=39 // pred_region
          %310 = dma.done [#allocation9], 4096
        $region56: #{tpu_custom_call.1} parent=39 // pred_fallthru
          _
        // Predicated region
        $region57: #{tpu_custom_call.1} parent=39 // pred_check
          %p311 = pneg %p141
        $region58: #{tpu_custom_call.1} parent=39 // pred_check_branch
          %313 = sbr.rel (%p311) target = $region60
        $region59: #{tpu_custom_call.1} parent=39 // pred_region
          %315 = dma.done [#allocation9], 128
        $region60: #{tpu_custom_call.1} parent=39 // pred_fallthru
          _
        %s316 = sand.u32 %s34, 1
        %s317 = scalar_lea.sflag [#allocation3], %s316
        %s318 = sand.u32 %s34, 1
        %s319 = smul.addr %s318, 8
        %s320 = scalar_lea.vmem [#allocation2], %s319
        %p321 = pneg %p47
        %p322 = pneg %p44
        %s323 = sand.u32 %s26, 1
        %s324 = scalar_lea.sflag [#allocation6], %s323
        %s325 = sand.u32 %s60, 1
        %s326 = smul.addr %s325, 8
        %s327 = scalar_lea.vmem [#allocation5], %s326
        %p328 = pneg %p73
        %p329 = pneg %p70
        %s330 = sand.u32 %s26, 1
        %s331 = scalar_lea.sflag [#allocation6], %s330
        %s332 = sand.u32 %s86, 1
        %s333 = smul.addr %s332, 8
        %s334 = scalar_lea.vmem [#allocation7], %s333
        %p335 = pneg %p99
        %p336 = pneg %p96
        %p337 = pneg %p120
        %p338 = pneg %p117
        %p339 = pneg %p141
        %p340 = pneg %p138
        %p341 = pneg %p167
        %p342 = pneg %p164
        %s343 = sand.u32 %s154, 1
        %s344 = scalar_lea.sflag [#allocation4], %s343
        %s345 = sand.u32 %s154, 1
        %s346 = smul.addr %s345, 8
        %s347 = scalar_lea.vmem [#allocation11], %s346
        %v349 = vld [vmem:[#allocation10] sm:$0x1]
        %v350 = vld [vmem:[#allocation10 + $0x1] sm:$0x1]
        %v351 = vld [vmem:[#allocation10 + $0x2] sm:$0x1]
        %v352 = vld [vmem:[#allocation10 + $0x3] sm:$0x1]
        %v353 = vld [vmem:[#allocation10 + $0x4] sm:$0x1]
        %v354 = vld [vmem:[#allocation10 + $0x5] sm:$0x1]
        %v355 = vld [vmem:[#allocation8] sm:$0xf]
        %v356 = vld [vmem:[#allocation8 + $0x4] sm:$0xf]
        %v357 = vld [vmem:[#allocation8 + $0x8] sm:$0xf]
        %v358 = vld [vmem:[#allocation8 + $0xc] sm:$0xf]
        %v359 = vld [vmem:[#allocation8 + $0x10] sm:$0xf]
        %v360 = vld [vmem:[#allocation8 + $0x14] sm:$0xf]
        %v361 = vld [vmem:[#allocation8 + $0x18] sm:$0xf]
        %v362 = vld [vmem:[#allocation8 + $0x1c] sm:$0xf]
        %v363 = vld [vmem:[#allocation8 + $0x20] sm:$0xf]
        %v364 = vld [vmem:[#allocation8 + $0x24] sm:$0xf]
        %v365 = vld [vmem:[#allocation8 + $0x28] sm:$0xf]
        %v366 = vld [vmem:[#allocation8 + $0x2c] sm:$0xf]
        %v367 = vld [vmem:[#allocation8 + $0x30] sm:$0xf]
        %v368 = vld [vmem:[#allocation8 + $0x34] sm:$0xf]
        %v369 = vld [vmem:[#allocation8 + $0x38] sm:$0xf]
        %v370 = vld [vmem:[#allocation8 + $0x3c] sm:$0xf]
        %v371 = vld [vmem:[#allocation8 + $0x40] sm:$0xf]
        %v372 = vld [vmem:[#allocation8 + $0x44] sm:$0xf]
        %v373 = vld [vmem:[#allocation8 + $0x48] sm:$0xf]
        %v374 = vld [vmem:[#allocation8 + $0x4c] sm:$0xf]
        %v375 = vld [vmem:[#allocation8 + $0x50] sm:$0xf]
        %v376 = vld [vmem:[#allocation8 + $0x54] sm:$0xf]
        %v377 = vld [vmem:[#allocation8 + $0x58] sm:$0xf]
        %v378 = vld [vmem:[#allocation8 + $0x5c] sm:$0xf]
        %v379 = vld [vmem:[#allocation8 + $0x60] sm:$0xf]
        %v380 = vld [vmem:[#allocation8 + $0x64] sm:$0xf]
        %v381 = vld [vmem:[#allocation8 + $0x68] sm:$0xf]
        %v382 = vld [vmem:[#allocation8 + $0x6c] sm:$0xf]
        %v383 = vld [vmem:[#allocation8 + $0x70] sm:$0xf]
        %v384 = vld [vmem:[#allocation8 + $0x74] sm:$0xf]
        %v385 = vld [vmem:[#allocation8 + $0x78] sm:$0xf]
        %v386 = vld [vmem:[#allocation8 + $0x7c] sm:$0xf]
        %v387 = vld [vmem:[#allocation8 + $0x80] sm:$0xf]
        %v388 = vld [vmem:[#allocation8 + $0x84] sm:$0xf]
        %v389 = vld [vmem:[#allocation8 + $0x88] sm:$0xf]
        %v390 = vld [vmem:[#allocation8 + $0x8c] sm:$0xf]
        %v391 = vld [vmem:[#allocation8 + $0x90] sm:$0xf]
        %v392 = vld [vmem:[#allocation8 + $0x94] sm:$0xf]
        %v393 = vld [vmem:[#allocation8 + $0x98] sm:$0xf]
        %v394 = vld [vmem:[#allocation8 + $0x9c] sm:$0xf]
        %v395 = vld [vmem:[#allocation8 + $0xa0] sm:$0xf]
        %v396 = vld [vmem:[#allocation8 + $0xa4] sm:$0xf]
        %v397 = vld [vmem:[#allocation8 + $0xa8] sm:$0xf]
        %v398 = vld [vmem:[#allocation8 + $0xac] sm:$0xf]
        %v399 = vld [vmem:[#allocation8 + $0xb0] sm:$0xf]
        %v400 = vld [vmem:[#allocation8 + $0xb4] sm:$0xf]
        %v401 = vld [vmem:[#allocation8 + $0xb8] sm:$0xf]
        %v402 = vld [vmem:[#allocation8 + $0xbc] sm:$0xf]
        %v403 = vld [vmem:[#allocation8 + $0xc0] sm:$0xf]
        %v404 = vld [vmem:[#allocation8 + $0xc4] sm:$0xf]
        %v405 = vld [vmem:[#allocation8 + $0xc8] sm:$0xf]
        %v406 = vld [vmem:[#allocation8 + $0xcc] sm:$0xf]
        %v407 = vld [vmem:[#allocation8 + $0xd0] sm:$0xf]
        %v408 = vld [vmem:[#allocation8 + $0xd4] sm:$0xf]
        %v409 = vld [vmem:[#allocation8 + $0xd8] sm:$0xf]
        %v410 = vld [vmem:[#allocation8 + $0xdc] sm:$0xf]
        %v411 = vld [vmem:[#allocation8 + $0xe0] sm:$0xf]
        %v412 = vld [vmem:[#allocation8 + $0xe4] sm:$0xf]
        %v413 = vld [vmem:[#allocation8 + $0xe8] sm:$0xf]
        %v414 = vld [vmem:[#allocation8 + $0xec] sm:$0xf]
        %v415 = vld [vmem:[#allocation8 + $0xf0] sm:$0xf]
        %v416 = vld [vmem:[#allocation8 + $0xf4] sm:$0xf]
        %v417 = vld [vmem:[#allocation8 + $0xf8] sm:$0xf]
        %v418 = vld [vmem:[#allocation8 + $0xfc] sm:$0xf]
        %v419 = vld [vmem:[%s280] sm:$0xff]
        %v420 = vld [vmem:[%s290] sm:$0xff]
        %v421 = vld [vmem:[%s300] sm:$0xff]
        %v422 = vpack.c.bf16 %v419, %v419
        %v423 = vperm.slane %v349, 0
        %v440 = vunpack.c.l.b16 %v355
        %v441 = vunpack.c.l.b16 %v356
        %v442 = vunpack.c.l.b16 %v357
        %v443 = vunpack.c.l.b16 %v358
        %v444 = vunpack.c.l.b16 %v359
        %v445 = vunpack.c.l.b16 %v360
        %v446 = vunpack.c.l.b16 %v361
        %v447 = vunpack.c.l.b16 %v362
        %v448 = vunpack.c.l.b16 %v363
        %v449 = vunpack.c.l.b16 %v364
        %v450 = vunpack.c.l.b16 %v365
        %v451 = vunpack.c.l.b16 %v366
        %v452 = vunpack.c.l.b16 %v367
        %v453 = vunpack.c.l.b16 %v368
        %v454 = vunpack.c.l.b16 %v369
        %v455 = vunpack.c.l.b16 %v370
        %v456 = vpack.c.b16 %v441, %v440
        %v457 = vpack.c.b16 %v443, %v442
        %v458 = vpack.c.b16 %v445, %v444
        %v459 = vpack.c.b16 %v447, %v446
        %v460 = vpack.c.b16 %v449, %v448
        %v461 = vpack.c.b16 %v451, %v450
        %v462 = vpack.c.b16 %v453, %v452
        %v463 = vpack.c.b16 %v455, %v454
        %472 = vmatpush.bf16.msra.mxu0 %v463
        %473 = vmatpush.bf16.msra.mxu0 %v462
        %474 = vmatpush.bf16.msra.mxu0 %v461
        %475 = vmatpush.bf16.msra.mxu0 %v460
        %476 = vmatpush.bf16.msra.mxu0 %v459
        %477 = vmatpush.bf16.msra.mxu0 %v458
        %478 = vmatpush.bf16.msra.mxu0 %v457
        %479 = vmatpush.bf16.msra.mxu0 %v456
        %480 = vmatmul.bf16.gmra.mxu0 %v422
        %v481 = vpop.f32.mrf.mxu0
        %v482 = vadd.f32 %v423, %v481
        %v483 = vpop.f32.mrf.mxu0
        %484 = vdwg.mxu0
        %v485 = vpack.c.bf16 %v420, %v420
        %v486 = vperm.slane %v350, 0
        %v503 = vunpack.c.l.b16 %v371
        %v504 = vunpack.c.l.b16 %v372
        %v505 = vunpack.c.l.b16 %v373
        %v506 = vunpack.c.l.b16 %v374
        %v507 = vunpack.c.l.b16 %v375
        %v508 = vunpack.c.l.b16 %v376
        %v509 = vunpack.c.l.b16 %v377
        %v510 = vunpack.c.l.b16 %v378
        %v511 = vunpack.c.l.b16 %v379
        %v512 = vunpack.c.l.b16 %v380
        %v513 = vunpack.c.l.b16 %v381
        %v514 = vunpack.c.l.b16 %v382
        %v515 = vunpack.c.l.b16 %v383
        %v516 = vunpack.c.l.b16 %v384
        %v517 = vunpack.c.l.b16 %v385
        %v518 = vunpack.c.l.b16 %v386
        %v519 = vpack.c.b16 %v504, %v503
        %v520 = vpack.c.b16 %v506, %v505
        %v521 = vpack.c.b16 %v508, %v507
        %v522 = vpack.c.b16 %v510, %v509
        %v523 = vpack.c.b16 %v512, %v511
        %v524 = vpack.c.b16 %v514, %v513
        %v525 = vpack.c.b16 %v516, %v515
        %v526 = vpack.c.b16 %v518, %v517
        %535 = vmatpush.bf16.msra.mxu0 %v526
        %536 = vmatpush.bf16.msra.mxu0 %v525
        %537 = vmatpush.bf16.msra.mxu0 %v524
        %538 = vmatpush.bf16.msra.mxu0 %v523
        %539 = vmatpush.bf16.msra.mxu0 %v522
        %540 = vmatpush.bf16.msra.mxu0 %v521
        %541 = vmatpush.bf16.msra.mxu0 %v520
        %542 = vmatpush.bf16.msra.mxu0 %v519
        %543 = vmatmul.bf16.gmra.mxu0 %v485
        %v544 = vpop.f32.mrf.mxu0
        %v545 = vadd.f32 %v486, %v544
        %v546 = vpop.f32.mrf.mxu0
        %547 = vdwg.mxu0
        %v548 = vpack.c.bf16 %v421, %v421
        %v549 = vperm.slane %v351, 0
        %v566 = vunpack.c.l.b16 %v387
        %v567 = vunpack.c.l.b16 %v388
        %v568 = vunpack.c.l.b16 %v389
        %v569 = vunpack.c.l.b16 %v390
        %v570 = vunpack.c.l.b16 %v391
        %v571 = vunpack.c.l.b16 %v392
        %v572 = vunpack.c.l.b16 %v393
        %v573 = vunpack.c.l.b16 %v394
        %v574 = vunpack.c.l.b16 %v395
        %v575 = vunpack.c.l.b16 %v396
        %v576 = vunpack.c.l.b16 %v397
        %v577 = vunpack.c.l.b16 %v398
        %v578 = vunpack.c.l.b16 %v399
        %v579 = vunpack.c.l.b16 %v400
        %v580 = vunpack.c.l.b16 %v401
        %v581 = vunpack.c.l.b16 %v402
        %v582 = vpack.c.b16 %v567, %v566
        %v583 = vpack.c.b16 %v569, %v568
        %v584 = vpack.c.b16 %v571, %v570
        %v585 = vpack.c.b16 %v573, %v572
        %v586 = vpack.c.b16 %v575, %v574
        %v587 = vpack.c.b16 %v577, %v576
        %v588 = vpack.c.b16 %v579, %v578
        %v589 = vpack.c.b16 %v581, %v580
        %598 = vmatpush.bf16.msra.mxu0 %v589
        %599 = vmatpush.bf16.msra.mxu0 %v588
        %600 = vmatpush.bf16.msra.mxu0 %v587
        %601 = vmatpush.bf16.msra.mxu0 %v586
        %602 = vmatpush.bf16.msra.mxu0 %v585
        %603 = vmatpush.bf16.msra.mxu0 %v584
        %604 = vmatpush.bf16.msra.mxu0 %v583
        %605 = vmatpush.bf16.msra.mxu0 %v582
        %606 = vmatmul.bf16.gmra.mxu0 %v548
        %v607 = vpop.f32.mrf.mxu0
        %v608 = vadd.f32 %v549, %v607
        %v609 = vpop.f32.mrf.mxu0
        %610 = vdwg.mxu0
        %v611 = vpack.c.bf16 %v482, %v482
        %v612 = vpack.c.bf16 %v545, %v545
        %vm613 = vcmask 261120
        %v615 = vsel %vm613, %v611, 0
        %v618 = vsel %vm613, %v612, 0
        %620 = vmatpush.bf16.xpose.msra.mxu0 0
        %621 = vmatpush.bf16.xpose.msra.mxu0 0
        %622 = vmatpush.bf16.xpose.msra.mxu0 0
        %623 = vmatpush.bf16.xpose.msra.mxu0 0
        %624 = vmatpush.bf16.xpose.msra.mxu0 0
        %625 = vmatpush.bf16.xpose.msra.mxu0 0
        %626 = vmatpush.bf16.xpose.msra.mxu0 0
        %627 = vmatpush.bf16.xpose.msra.mxu0 %v618
        %628 = vmatmul.bf16.gmra.mxu0 %v615
        %v629 = vpop.f32.mrf.mxu0
        %v630 = vadd.f32 0.0, %v629
        %v631 = vpop.f32.mrf.mxu0
        %632 = vdwg.mxu0
        %vm633 = vcmask 64512
        %v634 = vsel %vm633, %v630, -inf
        %635 = vmax.xlane.f32.xlu0 %v634
        %v636 = vpop.xlane.xlu0 %635
        %v637 = vsub.f32 %v630, %v636
        %v638 = vmul.f32 %v637, 1.442695
        %v639 = vpow.pop %v638
        %v640 = vsel %vm633, %v639, 0.0
        %641 = vadd.xlane.f32.xlu0 %v640
        %v642 = vpop.xlane.xlu0 %641
        %v643 = vrcp.pop %v642
        %v644 = vmul.f32 %v639, %v643
        %v645 = vpack.c.bf16 %v644, %v644
        %v646 = vpack.c.bf16 %v608, %v608
        %v648 = vsel %vm633, %v645, 0
        %vm650 = vcmask 1043456
        %v652 = vsel %vm650, %v646, 0
        %654 = vmatpush.bf16.msra.mxu0 0
        %655 = vmatpush.bf16.msra.mxu0 0
        %656 = vmatpush.bf16.msra.mxu0 0
        %657 = vmatpush.bf16.msra.mxu0 0
        %658 = vmatpush.bf16.msra.mxu0 0
        %659 = vmatpush.bf16.msra.mxu0 0
        %660 = vmatpush.bf16.msra.mxu0 0
        %661 = vmatpush.bf16.msra.mxu0 %v652
        %662 = vmatmul.bf16.gmra.mxu0 %v648
        %v663 = vpop.f32.mrf.mxu0
        %v664 = vadd.f32 0.0, %v663
        %v665 = vpop.f32.mrf.mxu0
        %666 = vdwg.mxu0
        %v668 = vunpack.c.l.b16 %v611
        %v669 = vpack.c.b16 %v668, %v668
        %670 = vrot.lane.b32.xlu0 %v669, 96
        %v671 = vpop.permute.xlu0 %670
        %v673 = vunpack.c.l.b16 %v612
        %v674 = vpack.c.b16 %v673, %v673
        %675 = vrot.lane.b32.xlu0 %v674, 96
        %v676 = vpop.permute.xlu0 %675
        %v678 = vsel %vm613, %v671, 0
        %v681 = vsel %vm613, %v676, 0
        %683 = vmatpush.bf16.xpose.msra.mxu0 0
        %684 = vmatpush.bf16.xpose.msra.mxu0 0
        %685 = vmatpush.bf16.xpose.msra.mxu0 0
        %686 = vmatpush.bf16.xpose.msra.mxu0 0
        %687 = vmatpush.bf16.xpose.msra.mxu0 0
        %688 = vmatpush.bf16.xpose.msra.mxu0 0
        %689 = vmatpush.bf16.xpose.msra.mxu0 0
        %690 = vmatpush.bf16.xpose.msra.mxu0 %v681
        %691 = vmatmul.bf16.gmra.mxu0 %v678
        %v692 = vpop.f32.mrf.mxu0
        %v693 = vadd.f32 0.0, %v692
        %v694 = vpop.f32.mrf.mxu0
        %695 = vdwg.mxu0
        %v696 = vsel %vm633, %v693, -inf
        %697 = vmax.xlane.f32.xlu0 %v696
        %v698 = vpop.xlane.xlu0 %697
        %v699 = vsub.f32 %v693, %v698
        %v700 = vmul.f32 %v699, 1.442695
        %v701 = vpow.pop %v700
        %v702 = vsel %vm633, %v701, 0.0
        %703 = vadd.xlane.f32.xlu0 %v702
        %v704 = vpop.xlane.xlu0 %703
        %v705 = vrcp.pop %v704
        %v706 = vmul.f32 %v701, %v705
        %v707 = vpack.c.bf16 %v706, %v706
        %v709 = vunpack.c.l.b16 %v646
        %v710 = vpack.c.b16 %v709, %v709
        %711 = vrot.lane.b32.xlu0 %v710, 96
        %v712 = vpop.permute.xlu0 %711
        %v714 = vsel %vm633, %v707, 0
        %v717 = vsel %vm650, %v712, 0
        %719 = vmatpush.bf16.msra.mxu0 0
        %720 = vmatpush.bf16.msra.mxu0 0
        %721 = vmatpush.bf16.msra.mxu0 0
        %722 = vmatpush.bf16.msra.mxu0 0
        %723 = vmatpush.bf16.msra.mxu0 0
        %724 = vmatpush.bf16.msra.mxu0 0
        %725 = vmatpush.bf16.msra.mxu0 0
        %726 = vmatpush.bf16.msra.mxu0 %v717
        %727 = vmatmul.bf16.gmra.mxu0 %v714
        %v728 = vpop.f32.mrf.mxu0
        %v729 = vadd.f32 0.0, %v728
        %v730 = vpop.f32.mrf.mxu0
        %731 = vdwg.mxu0
        %732 = vrot.lane.b32.xlu0 %v669, 64
        %v733 = vpop.permute.xlu0 %732
        %734 = vrot.lane.b32.xlu0 %v674, 64
        %v735 = vpop.permute.xlu0 %734
        %v737 = vsel %vm613, %v733, 0
        %v740 = vsel %vm613, %v735, 0
        %742 = vmatpush.bf16.xpose.msra.mxu0 0
        %743 = vmatpush.bf16.xpose.msra.mxu0 0
        %744 = vmatpush.bf16.xpose.msra.mxu0 0
        %745 = vmatpush.bf16.xpose.msra.mxu0 0
        %746 = vmatpush.bf16.xpose.msra.mxu0 0
        %747 = vmatpush.bf16.xpose.msra.mxu0 0
        %748 = vmatpush.bf16.xpose.msra.mxu0 0
        %749 = vmatpush.bf16.xpose.msra.mxu0 %v740
        %750 = vmatmul.bf16.gmra.mxu0 %v737
        %v751 = vpop.f32.mrf.mxu0
        %v752 = vadd.f32 0.0, %v751
        %v753 = vpop.f32.mrf.mxu0
        %754 = vdwg.mxu0
        %v755 = vsel %vm633, %v752, -inf
        %756 = vmax.xlane.f32.xlu0 %v755
        %v757 = vpop.xlane.xlu0 %756
        %v758 = vsub.f32 %v752, %v757
        %v759 = vmul.f32 %v758, 1.442695
        %v760 = vpow.pop %v759
        %v761 = vsel %vm633, %v760, 0.0
        %762 = vadd.xlane.f32.xlu0 %v761
        %v763 = vpop.xlane.xlu0 %762
        %v764 = vrcp.pop %v763
        %v765 = vmul.f32 %v760, %v764
        %v766 = vpack.c.bf16 %v765, %v765
        %767 = vrot.lane.b32.xlu0 %v710, 64
        %v768 = vpop.permute.xlu0 %767
        %v770 = vsel %vm633, %v766, 0
        %v773 = vsel %vm650, %v768, 0
        %775 = vmatpush.bf16.msra.mxu0 0
        %776 = vmatpush.bf16.msra.mxu0 0
        %777 = vmatpush.bf16.msra.mxu0 0
        %778 = vmatpush.bf16.msra.mxu0 0
        %779 = vmatpush.bf16.msra.mxu0 0
        %780 = vmatpush.bf16.msra.mxu0 0
        %781 = vmatpush.bf16.msra.mxu0 0
        %782 = vmatpush.bf16.msra.mxu0 %v773
        %783 = vmatmul.bf16.gmra.mxu0 %v770
        %v784 = vpop.f32.mrf.mxu0
        %v785 = vadd.f32 0.0, %v784
        %v786 = vpop.f32.mrf.mxu0
        %787 = vdwg.mxu0
        %788 = vrot.lane.b32.xlu0 %v669, 32
        %v789 = vpop.permute.xlu0 %788
        %790 = vrot.lane.b32.xlu0 %v674, 32
        %v791 = vpop.permute.xlu0 %790
        %v793 = vsel %vm613, %v789, 0
        %v796 = vsel %vm613, %v791, 0
        %798 = vmatpush.bf16.xpose.msra.mxu0 0
        %799 = vmatpush.bf16.xpose.msra.mxu0 0
        %800 = vmatpush.bf16.xpose.msra.mxu0 0
        %801 = vmatpush.bf16.xpose.msra.mxu0 0
        %802 = vmatpush.bf16.xpose.msra.mxu0 0
        %803 = vmatpush.bf16.xpose.msra.mxu0 0
        %804 = vmatpush.bf16.xpose.msra.mxu0 0
        %805 = vmatpush.bf16.xpose.msra.mxu0 %v796
        %806 = vmatmul.bf16.gmra.mxu0 %v793
        %v807 = vpop.f32.mrf.mxu0
        %v808 = vadd.f32 0.0, %v807
        %v809 = vpop.f32.mrf.mxu0
        %810 = vdwg.mxu0
        %v811 = vsel %vm633, %v808, -inf
        %812 = vmax.xlane.f32.xlu0 %v811
        %v813 = vpop.xlane.xlu0 %812
        %v814 = vsub.f32 %v808, %v813
        %v815 = vmul.f32 %v814, 1.442695
        %v816 = vpow.pop %v815
        %v817 = vsel %vm633, %v816, 0.0
        %818 = vadd.xlane.f32.xlu0 %v817
        %v819 = vpop.xlane.xlu0 %818
        %v820 = vrcp.pop %v819
        %v821 = vmul.f32 %v816, %v820
        %v822 = vpack.c.bf16 %v821, %v821
        %823 = vrot.lane.b32.xlu0 %v710, 32
        %v824 = vpop.permute.xlu0 %823
        %v826 = vsel %vm633, %v822, 0
        %v829 = vsel %vm650, %v824, 0
        %831 = vmatpush.bf16.msra.mxu0 0
        %832 = vmatpush.bf16.msra.mxu0 0
        %833 = vmatpush.bf16.msra.mxu0 0
        %834 = vmatpush.bf16.msra.mxu0 0
        %835 = vmatpush.bf16.msra.mxu0 0
        %836 = vmatpush.bf16.msra.mxu0 0
        %837 = vmatpush.bf16.msra.mxu0 0
        %838 = vmatpush.bf16.msra.mxu0 %v829
        %839 = vmatmul.bf16.gmra.mxu0 %v826
        %v840 = vpop.f32.mrf.mxu0
        %v841 = vadd.f32 0.0, %v840
        %v842 = vpop.f32.mrf.mxu0
        %843 = vdwg.mxu0
        %845 = vrot.lane.b32.xlu0 %v729, 32
        %v846 = vpop.permute.xlu0 %845
        %849 = vrot.lane.b32.xlu0 %v785, 64
        %v850 = vpop.permute.xlu0 %849
        %853 = vrot.lane.b32.xlu0 %v841, 96
        %v854 = vpop.permute.xlu0 %853
        %v856 = vsel %vm613, %v664, %v846
        %vm857 = vcmask 523264
        %v858 = vsel %vm857, %v856, %v850
        %vm859 = vcmask 785408
        %v860 = vsel %vm859, %v858, %v854
        %v861 = vpack.c.bf16 %v860, %v860
        %v862 = vperm.slane %v352, 0
        %v879 = vunpack.c.l.b16 %v403
        %v880 = vunpack.c.l.b16 %v404
        %v881 = vunpack.c.l.b16 %v405
        %v882 = vunpack.c.l.b16 %v406
        %v883 = vunpack.c.l.b16 %v407
        %v884 = vunpack.c.l.b16 %v408
        %v885 = vunpack.c.l.b16 %v409
        %v886 = vunpack.c.l.b16 %v410
        %v887 = vunpack.c.l.b16 %v411
        %v888 = vunpack.c.l.b16 %v412
        %v889 = vunpack.c.l.b16 %v413
        %v890 = vunpack.c.l.b16 %v414
        %v891 = vunpack.c.l.b16 %v415
        %v892 = vunpack.c.l.b16 %v416
        %v893 = vunpack.c.l.b16 %v417
        %v894 = vunpack.c.l.b16 %v418
        %v895 = vpack.c.b16 %v880, %v879
        %v896 = vpack.c.b16 %v882, %v881
        %v897 = vpack.c.b16 %v884, %v883
        %v898 = vpack.c.b16 %v886, %v885
        %v899 = vpack.c.b16 %v888, %v887
        %v900 = vpack.c.b16 %v890, %v889
        %v901 = vpack.c.b16 %v892, %v891
        %v902 = vpack.c.b16 %v894, %v893
        %911 = vmatpush.bf16.msra.mxu0 %v902
        %912 = vmatpush.bf16.msra.mxu0 %v901
        %913 = vmatpush.bf16.msra.mxu0 %v900
        %914 = vmatpush.bf16.msra.mxu0 %v899
        %915 = vmatpush.bf16.msra.mxu0 %v898
        %916 = vmatpush.bf16.msra.mxu0 %v897
        %917 = vmatpush.bf16.msra.mxu0 %v896
        %918 = vmatpush.bf16.msra.mxu0 %v895
        %919 = vmatmul.bf16.gmra.mxu0 %v861
        %v920 = vpop.f32.mrf.mxu0
        %v921 = vadd.f32 %v862, %v920
        %v922 = vpop.f32.mrf.mxu0
        %923 = vdwg.mxu0
        %v924 = vadd.f32 %v419, %v921
        %925 = vadd.xlane.f32.xlu0 %v924
        %v926 = vpop.xlane.xlu0 %925
        %v927 = vrcp.pop 128.0
        %v928 = vmul.f32 128.0, %v927
        %v929 = vsub.f32 1.0, %v928
        %v930 = vmul.f32 %v927, %v929
        %v931 = vadd.f32 %v927, %v930
        %vm932 = vweird.f32 %v927
        %v933 = vsel %vm932, %v927, %v931
        %v934 = vmul.f32 %v926, %v933
        %v935 = vmul.f32 %v924, %v924
        %936 = vadd.xlane.f32.xlu0 %v935
        %v937 = vpop.xlane.xlu0 %936
        %v938 = vmul.f32 %v937, %v933
        %v939 = vmul.f32 %v934, %v934
        %v940 = vsub.f32 %v938, %v939
        %v941 = vsub.f32 %v924, %v934
        %v942 = vadd.f32 %v940, 1e-05
        %v943 = vrsqrt.pop %v942
        %v944 = vmul.f32 %v943, %v942
        %v945 = vmul.f32 %v944, %v943
        %v946 = vmul.f32 0.5, %v945
        %v947 = vsub.f32 1.5, %v946
        %v948 = vmul.f32 %v943, %v947
        %vm949 = vweird.f32 %v942
        %vm950 = vweird.f32 %v943
        %vm951 = vmor %vm949, %vm950
        %v952 = vsel %vm951, %v943, %v948
        %v953 = vmul.f32 %v941, %v952
        %v954 = vperm.slane %v353, 0
        %v955 = vmul.f32 %v953, %v954
        %v956 = vperm.slane %v354, 0
        %v957 = vadd.f32 %v955, %v956
        %958 = vst [vmem:[%s347] sm:$0xff] %v957
        %s959 = sand.u32 %s154, 1
        %s960 = scalar_lea.sflag [#allocation4], %s959
        %s961 = sand.u32 %s154, 1
        %s962 = smul.addr %s961, 8
        %s963 = scalar_lea.vmem [#allocation11], %s962
        // Predicated region
        $region61: #{tpu_custom_call.1} parent=39 // pred_check
          %p964 = pneg %p164
        $region62: #{tpu_custom_call.1} parent=39 // pred_check_branch
          %966 = sbr.rel (%p964) target = $region64
        $region63: #{tpu_custom_call.1} parent=39 // pred_region
          %968 = vsyncadd %s960, 0
          %s969 = smul.addr %s26, 8
          %s970 = scalar_lea.hbm %s5, %s969
          %s972 = sshll.u32 %s963, 4
          %s973 = int_to_ptr.vmem [resolvable:$true] %s972
          %s974 = sshll.u32 %s970, 4
          %s975 = int_to_ptr.hbm [resolvable:$true] %s974
          %977 = dma.vmem_to_hbm [thread:$0]  %s973, 128, %s975, %s960
        $region64: #{tpu_custom_call.1} parent=39 // pred_fallthru
          _
      $region40: #{tpu_custom_call.1} parent=5 // pred_fallthru
        _
      %p978 = scmp.le.s32.totalorder 2, %s21
      // Predicated region
      $region65: #{tpu_custom_call.1} parent=5 // pred_check
        %p979 = pneg %p978
      $region66: #{tpu_custom_call.1} parent=5 // pred_check_branch
        %981 = sbr.rel (%p979) target = $region68
      $region67: #{tpu_custom_call.1} parent=5 // pred_region
        %s982 = ssub.s32 %s21, 2
        // Predicated region
        $region69: #{tpu_custom_call.1} parent=67 // pred_check
          %p983 = pneg %p170
        $region70: #{tpu_custom_call.1} parent=67 // pred_check_branch
          %985 = sbr.rel (%p983) target = $region72
        $region71: #{tpu_custom_call.1} parent=67 // pred_region
          %s986 = sand.u32 %s155, 1
          %s987 = scalar_lea.sflag [#allocation4], %s986
          %s988 = sand.u32 %s155, 1
          %s989 = smul.addr %s988, 8
          %s990 = scalar_lea.vmem [#allocation11], %s989
          %992 = dma.done %s987, 128
        $region72: #{tpu_custom_call.1} parent=67 // pred_fallthru
          _
      $region68: #{tpu_custom_call.1} parent=5 // pred_fallthru
        _
    $region6: #{tpu_custom_call.1} parent=1 // loop_footer
      %s25 = sadd.s32 1, %s21
    $region7: #{tpu_custom_call.1} parent=1 // loop_footer_branch
      %20 = sbr.rel target = $region3
    $region8: #{tpu_custom_call.1} parent=1 // loop_exit
      _
    %993 = vsyncpa [#allocation3], 1
    %s994 = scalar_lea.sflag [#allocation3], 1
    %995 = vsyncpa %s994, 1
    %996 = vsyncpa [#allocation6], 1
    %s997 = scalar_lea.sflag [#allocation6], 1
    %998 = vsyncpa %s997, 1
    %999 = vsyncpa [#allocation9], 1
    %1000 = vsyncpa [#allocation4], 1
    %s1001 = scalar_lea.sflag [#allocation4], 1
    %1002 = vsyncpa %s1001, 1

</llo_original>
